<compile_context>
chip_gen: v7x
topology: tpu7x:2x2x1
jax: 0.10.0
libtpu: 0.0.40
codegen_flags: <defaults>
</compile_context>

<pallas_src>
from functools import partial

import numpy as np
import jax
import jax.numpy as jnp
from jax.experimental import pallas as pl
from jax.experimental.pallas import tpu as pltpu

IGNORE_INDEX = -1
EPS = 1e-5
LANES = 128
NEG_INF_BIAS = -1e30

# Production defaults (FLAVA: H=768, V=30522, thousands of masked rows).
# TM amortizes the decoder-weight stream (w2t is re-read once per row tile);
# TV keeps per-step overhead low and the MXU fed.  Both fit comfortably in
# v7x's 64 MiB VMEM (see _vmem_limit_bytes).
TM_DEFAULT = 256
TV_DEFAULT = 2048

MLM_WEIGHT = 1.0
MIM_WEIGHT = 1.0


def _round_up(x, m):
    return ((x + m - 1) // m) * m


def _vmem_limit_bytes(tm, tv, h):
    """Rough double-buffered VMEM estimate, clamped to a v7x-safe ceiling."""
    bf16, f32 = 2, 4
    est = 2 * (tm * h * bf16          # x row tile
               + h * h * bf16         # w1 (resident)
               + 3 * h * f32          # b1 / gamma / beta
               + h * tv * bf16        # w2t vocab tile
               + tv * f32             # b2 vocab tile
               + tm * LANES * f32     # labels (lane-padded)
               + tm * tv * bf16       # logits out tile (bf16)
               + 8 * LANES * f32)     # ce out tile
    est += tm * h * bf16 + 3 * tm * LANES * f32   # scratch (h_sc, m/l/tgt)
    est = int(est * 1.5) + (4 << 20)               # layout/alignment slack
    return int(max(32 << 20, min(est, 56 << 20)))


def _masked_head_ce_kernel(n_ref,                                      # scalar prefetch (SMEM)
                           x_ref, w1_ref, b1_ref, gamma_ref, beta_ref,  # inputs
                           w2t_ref, b2_ref, labels_ref,
                           logits_ref, ce_ref,                          # outputs
                           h_sc, m_sc, l_sc, tgt_sc):                   # VMEM scratch
    i = pl.program_id(0)          # row tile          ("parallel")
    j = pl.program_id(1)          # vocab tile        ("arbitrary" / reduction)
    tm, tv = logits_ref.shape
    n_live = n_ref[0]
    row_live = i * tm < n_live

    # ---- head: dense -> exact GELU -> fp32 LayerNorm, once per LIVE row tile ----
    @pl.when(jnp.logical_and(row_live, j == 0))
    def _():
        x = x_ref[...]                                           # bf16 rows
        h = jnp.dot(x, w1_ref[...], preferred_element_type=jnp.float32)
        h = h + b1_ref[...]
        inv_sqrt2 = jnp.float32(0.7071067811865476)
        h = 0.5 * h * (1.0 + jax.lax.erf(h * inv_sqrt2))         # exact GELU
        mean = jnp.mean(h, axis=-1, keepdims=True)
        var = jnp.mean(jnp.square(h - mean), axis=-1, keepdims=True)
        h = (h - mean) * jax.lax.rsqrt(var + jnp.float32(EPS))
        h = h * gamma_ref[...] + beta_ref[...]
        h_sc[...] = h.astype(jnp.bfloat16)
        m_sc[...] = jnp.full(m_sc.shape, -jnp.inf, jnp.float32)
        l_sc[...] = jnp.zeros(l_sc.shape, jnp.float32)
        tgt_sc[...] = jnp.zeros(tgt_sc.shape, jnp.float32)

    # ---- decoder vocab tile + online LSE / target-logit accumulation ----
    # Skipped entirely for dead row tiles (rows past the masked count).
    @pl.when(row_live)
    def _():
        logits = jnp.dot(h_sc[...], w2t_ref[...],
                         preferred_element_type=jnp.float32) + b2_ref[...]
        logits_ref[...] = logits.astype(logits_ref.dtype)        # bf16 store

        m_prev = m_sc[...]
        m_new = jnp.maximum(m_prev, jnp.max(logits, axis=-1, keepdims=True))
        alpha = jnp.exp(m_prev - m_new)
        l_sc[...] = alpha * l_sc[...] + jnp.sum(jnp.exp(logits - m_new),
                                                axis=-1, keepdims=True)
        m_sc[...] = m_new

        # shift the (tm,1) label instead of adding j*tv to the full iota
        vocab_ids = jax.lax.broadcasted_iota(jnp.int32, logits.shape, 1)
        local_lbl = labels_ref[...] - j * tv                      # (tm, 1)
        tgt_sc[...] = tgt_sc[...] + jnp.sum(
            jnp.where(vocab_ids == local_lbl, logits, 0.0),
            axis=-1, keepdims=True)

    # ---- finalize: one lane-dense partial NLL sum per row tile ----
    @pl.when(j == pl.num_programs(1) - 1)
    def _():
        lse = m_sc[...] + jnp.log(l_sc[...])
        nll = lse - tgt_sc[...]                                    # (tm, 1)
        row = jax.lax.broadcasted_iota(jnp.int32, (tm, 1), 0) + i * tm
        valid = (row < n_live).astype(jnp.float32)
        tile_sum = jnp.sum(nll * valid)
        tile_sum = jnp.where(row_live, tile_sum, jnp.float32(0.0))  # dead tile -> 0
        ce_ref[...] = jnp.broadcast_to(tile_sum, ce_ref.shape)


@partial(jax.jit, static_argnames=("tm", "tv"))
def _masked_prediction_forward(hidden_states, masked_labels,
                               w1, b1, gamma, beta, w2t, b2, *, tm, tv):
    H = hidden_states.shape[-1]
    V = w2t.shape[-1]

    # bf16 BEFORE the gather: halves gather traffic + x DMA; removes in-kernel cast
    hs = hidden_states.reshape(-1, H).astype(jnp.bfloat16)
    lbl = masked_labels.reshape(-1).astype(jnp.int32)
    n_max = lbl.shape[0]

    # On-device, static-shape "gather" of masked rows: stable sort puts masked
    # rows first in original row-major order (matches torch boolean indexing).
    mask = lbl != IGNORE_INDEX
    order = jnp.argsort(jnp.where(mask, jnp.int32(0), jnp.int32(1)), stable=True)
    x = jnp.take(hs, order, axis=0)                     # (N, H) bf16
    labels = jnp.take(lbl, order)[:, None]              # (N, 1)
    n_valid = jnp.sum(mask).astype(jnp.int32)

    n_pad = _round_up(n_max, tm)
    if n_pad != n_max:
        x = jnp.pad(x, ((0, n_pad - n_max), (0, 0)))
        labels = jnp.pad(labels, ((0, n_pad - n_max), (0, 0)),
                         constant_values=IGNORE_INDEX)

    # Pad the vocab to a multiple of tv; padded columns get a hugely negative
    # bias so they never affect the running max/LSE and never match a label.
    v_pad = _round_up(V, tv)
    w1b = w1.astype(jnp.bfloat16)
    w2tb = w2t.astype(jnp.bfloat16)
    b2f = b2.astype(jnp.float32)
    if v_pad != V:
        w2tb = jnp.pad(w2tb, ((0, 0), (0, v_pad - V)))
        b2f = jnp.pad(b2f, ((0, 0), (0, v_pad - V)),
                      constant_values=jnp.float32(NEG_INF_BIAS))

    n_row_tiles = n_pad // tm
    grid = (n_row_tiles, v_pad // tv)

    def _vblk(i, j, n):
        # dead row tiles keep re-visiting vocab block 0 so their weight /
        # bias / logits DMAs collapse to at most one tile per dead row tile
        live = (i * tm < n[0]).astype(jnp.int32)
        return j * live

    logits, ce = pl.pallas_call(
        _masked_head_ce_kernel,
        out_shape=(jax.ShapeDtypeStruct((n_pad, v_pad), jnp.bfloat16),
                   jax.ShapeDtypeStruct((n_row_tiles, 8, LANES), jnp.float32)),
        grid_spec=pltpu.PrefetchScalarGridSpec(
            num_scalar_prefetch=1,
            grid=grid,
            in_specs=[
                pl.BlockSpec((tm, H), lambda i, j, n: (i, 0)),             # x rows
                pl.BlockSpec((H, H), lambda i, j, n: (0, 0)),              # w1 (resident)
                pl.BlockSpec((1, H), lambda i, j, n: (0, 0)),              # b1
                pl.BlockSpec((1, H), lambda i, j, n: (0, 0)),              # gamma
                pl.BlockSpec((1, H), lambda i, j, n: (0, 0)),              # beta
                pl.BlockSpec((H, tv), lambda i, j, n: (0, _vblk(i, j, n))),  # w2t tile
                pl.BlockSpec((1, tv), lambda i, j, n: (0, _vblk(i, j, n))),  # b2 tile
                pl.BlockSpec((tm, 1), lambda i, j, n: (i, 0)),             # labels
            ],
            out_specs=(
                pl.BlockSpec((tm, tv), lambda i, j, n: (i, _vblk(i, j, n))),   # logits
                pl.BlockSpec((1, 8, LANES), lambda i, j, n: (i, 0, 0)),        # per-tile NLL sum
            ),
            scratch_shapes=[
                pltpu.VMEM((tm, H), jnp.bfloat16),   # cached post-LN activations
                pltpu.VMEM((tm, 1), jnp.float32),    # running max
                pltpu.VMEM((tm, 1), jnp.float32),    # running sum-exp
                pltpu.VMEM((tm, 1), jnp.float32),    # target-logit accumulator
            ],
        ),
        compiler_params=pltpu.CompilerParams(
            dimension_semantics=("parallel", "arbitrary"),
            vmem_limit_bytes=_vmem_limit_bytes(tm, tv, H),
        ),
    )(jnp.reshape(n_valid, (1,)), x, w1b, b1, gamma, beta, w2tb, b2f, labels)

    # mean over masked rows; nan_to_num(0) when there are no masked tokens
    total = jnp.sum(ce[:, 0, 0])
    denom = jnp.maximum(n_valid.astype(jnp.float32), 1.0)
    loss = jnp.where(n_valid > 0, total / denom, jnp.float32(0.0))
    return logits, loss, n_valid


def masked_prediction_loss(hidden_states, masked_labels, params, *, tm=None, tv=None):
    """MaskedPredictionLoss: returns (padded bf16 logits [N_pad, V_pad], loss, n_masked)."""
    w1, b1, gamma, beta, w2t, b2 = params
    V = w2t.shape[-1]
    n_max = int(np.prod(masked_labels.shape))
    if tm is None:
        tm = min(TM_DEFAULT, _round_up(n_max, 8))
    if tv is None:
        tv = min(TV_DEFAULT, _round_up(V, LANES))
    return _masked_prediction_forward(hidden_states, masked_labels,
                                      w1, b1, gamma, beta, w2t, b2, tm=tm, tv=tv)


def flava_pretraining_loss(*, text_masked_sequence, image_masked_sequence,
                           mlm_labels, mim_labels, mlm_params, mim_params,
                           tm=None, tv=None):
    """FLAVAPretrainingLoss forward for the unimodal masked branches
    (multimodal_masked_sequence is None): mim_loss + mlm_loss, each weighted.
    """
    # TODO(synk): ITM loss (pooler + two-way head), the MMM losses and the
    # global contrastive loss (cross-device all_gather, logit-scale clamp)
    # are not implemented in this kernel.
    s_img = mim_labels.shape[1]
    mim_logits, mim_loss, mim_n = masked_prediction_loss(
        image_masked_sequence[:, -s_img:, :], mim_labels, mim_params, tm=tm, tv=tv)
    s_txt = mlm_labels.shape[1]
    mlm_logits, mlm_loss, mlm_n = masked_prediction_loss(
        text_masked_sequence[:, -s_txt:, :], mlm_labels, mlm_params, tm=tm, tv=tv)
    mim_loss = MIM_WEIGHT * mim_loss
    mlm_loss = MLM_WEIGHT * mlm_loss
    return {
        "mim_logits": mim_logits, "mim_loss": mim_loss, "mim_n": mim_n,
        "mlm_logits": mlm_logits, "mlm_loss": mlm_loss, "mlm_n": mlm_n,
        "total_loss": mim_loss + mlm_loss,
    }


def init_params(key, hidden, vocab):
    k1, k2, k3 = jax.random.split(key, 3)
    # weights stored in bf16 for MXU throughput / halved DMA traffic
    w1 = (jax.random.normal(k1, (hidden, hidden), jnp.float32) * 0.02).astype(jnp.bfloat16)
    b1 = jax.random.normal(k2, (1, hidden), jnp.float32) * 0.02
    gamma = jnp.ones((1, hidden), jnp.float32)            # LayerNorm weight
    beta = jnp.zeros((1, hidden), jnp.float32)            # LayerNorm bias
    # torch decoder weight is [V, H]; kernel uses its transpose [H, V]
    w2t = (jax.random.normal(k3, (hidden, vocab), jnp.float32) * 0.02).astype(jnp.bfloat16)
    b2 = jnp.zeros((1, vocab), jnp.float32)               # shared bias, init zeros
    return (w1, b1, gamma, beta, w2t, b2)


def _reference_masked_prediction(hidden_states, masked_labels, params):
    """Pure-JAX fp32 reference of MaskedPredictionLoss."""
    w1, b1, gamma, beta, w2t, b2 = [p.astype(jnp.float32) for p in params]
    H = hidden_states.shape[-1]
    hs = np.asarray(hidden_states, np.float32).reshape(-1, H)
    lbl = np.asarray(masked_labels).reshape(-1)
    mask = lbl != IGNORE_INDEX
    x = jnp.asarray(hs[mask])
    sel = jnp.asarray(lbl[mask].astype(np.int32))
    h = x @ w1 + b1
    h = jax.nn.gelu(h, approximate=False)
    mean = jnp.mean(h, axis=-1, keepdims=True)
    var = jnp.mean(jnp.square(h - mean), axis=-1, keepdims=True)
    h = (h - mean) / jnp.sqrt(var + EPS) * gamma + beta
    logits = h @ w2t + b2
    if int(sel.shape[0]) == 0:
        return logits, jnp.float32(0.0)
    logp = jax.nn.log_softmax(logits, axis=-1)
    nll = -jnp.take_along_axis(logp, sel[:, None], axis=-1)
    return logits, jnp.mean(nll)


if __name__ == "__main__":
    key = jax.random.PRNGKey(0)
    (k_mlm_p, k_mim_p, k_txt, k_img,
     k_tl, k_il, k_tm, k_im) = jax.random.split(key, 8)

    HIDDEN = 128          # small stand-in for 768 (lane-aligned)
    TEXT_VOCAB = 500      # small stand-in for 30522 (NOT a multiple of 128 ->
    IMAGE_VOCAB = 260     # exercises the vocab-padding/masking path)
    B, S_TXT, S_IMG = 2, 8, 8

    mlm_params = init_params(k_mlm_p, HIDDEN, TEXT_VOCAB)
    mim_params = init_params(k_mim_p, HIDDEN, IMAGE_VOCAB)

    text_masked_sequence = jax.random.normal(k_txt, (B, S_TXT, HIDDEN), jnp.float32)
    # image encoder emits an extra leading CLS position; loss slices [:, -S_IMG:, :]
    image_masked_sequence = jax.random.normal(k_img, (B, S_IMG + 1, HIDDEN), jnp.float32)

    mlm_labels_full = jax.random.randint(k_tl, (B, S_TXT), 0, TEXT_VOCAB, jnp.int32)
    mim_labels_full = jax.random.randint(k_il, (B, S_IMG), 0, IMAGE_VOCAB, jnp.int32)
    mlm_labels = jnp.where(jax.random.bernoulli(k_tm, 0.5, (B, S_TXT)),
                           jnp.int32(IGNORE_INDEX), mlm_labels_full)
    mim_labels = jnp.where(jax.random.bernoulli(k_im, 0.5, (B, S_IMG)),
                           jnp.int32(IGNORE_INDEX), mim_labels_full)

    # Small tile overrides so the toy shapes exercise multiple row tiles
    # (including dead ones) and multiple vocab tiles; production defaults are
    # TM=256 / TV=2048 when tm/tv are left as None.
    out = flava_pretraining_loss(
        text_masked_sequence=text_masked_sequence,
        image_masked_sequence=image_masked_sequence,
        mlm_labels=mlm_labels, mim_labels=mim_labels,
        mlm_params=mlm_params, mim_params=mim_params,
        tm=8, tv=128)
    jax.block_until_ready(out)

    # ---- check against pure-JAX fp32 references ----
    ref_mlm_logits, ref_mlm_loss = _reference_masked_prediction(
        text_masked_sequence, mlm_labels, mlm_params)
    ref_mim_logits, ref_mim_loss = _reference_masked_prediction(
        image_masked_sequence[:, -S_IMG:, :], mim_labels, mim_params)

    n_mlm = int(out["mlm_n"])
    n_mim = int(out["mim_n"])
    got_mlm = np.asarray(out["mlm_logits"][:n_mlm, :TEXT_VOCAB].astype(jnp.float32))
    got_mim = np.asarray(out["mim_logits"][:n_mim, :IMAGE_VOCAB].astype(jnp.float32))
    np.testing.assert_allclose(got_mlm, np.asarray(ref_mlm_logits),
                               rtol=3e-2, atol=3e-2)
    np.testing.assert_allclose(got_mim, np.asarray(ref_mim_logits),
                               rtol=3e-2, atol=3e-2)
    np.testing.assert_allclose(float(out["mlm_loss"]),
                               float(MLM_WEIGHT * ref_mlm_loss), rtol=2e-2, atol=2e-2)
    np.testing.assert_allclose(float(out["mim_loss"]),
                               float(MIM_WEIGHT * ref_mim_loss), rtol=2e-2, atol=2e-2)

    print("KERNEL_OK")
</pallas_src>

<mosaic_0001>
module attributes {stable_mosaic.version = 11 : i64} {
  func.func @_masked_head_ce_kernel(%arg0: i32, %arg1: i32, %arg2: memref<1xi32, #tpu.memory_space<smem>>, %arg3: memref<8x128xbf16, #tpu.memory_space<vmem>>, %arg4: memref<128x128xbf16, #tpu.memory_space<vmem>>, %arg5: memref<1x128xf32, #tpu.memory_space<vmem>>, %arg6: memref<1x128xf32, #tpu.memory_space<vmem>>, %arg7: memref<1x128xf32, #tpu.memory_space<vmem>>, %arg8: memref<128x128xbf16, #tpu.memory_space<vmem>>, %arg9: memref<1x128xf32, #tpu.memory_space<vmem>>, %arg10: memref<8x1xi32, #tpu.memory_space<vmem>>, %arg11: memref<8x128xbf16, #tpu.memory_space<vmem>>, %arg12: memref<1x8x128xf32, #tpu.memory_space<vmem>>, %arg13: memref<8x128xbf16, #tpu.memory_space<vmem>>, %arg14: memref<8x1xf32, #tpu.memory_space<vmem>>, %arg15: memref<8x1xf32, #tpu.memory_space<vmem>>, %arg16: memref<8x1xf32, #tpu.memory_space<vmem>>) attributes {dimension_semantics = [#tpu.dimension_semantics<parallel>, #tpu.dimension_semantics<arbitrary>], iteration_bounds = array<i64: 2, 3>, scalar_prefetch = 1 : i64, scratch_operands = 4 : i64, tpu.core_type = #tpu.core_type<tc>, window_params = [{transform_indices = @transform_0, window_bounds = array<i64: 8, 128>}, {pipeline_mode = #tpu.pipeline_mode<synchronous>, transform_indices = @transform_1, window_bounds = array<i64: 128, 128>}, {pipeline_mode = #tpu.pipeline_mode<synchronous>, transform_indices = @transform_2, window_bounds = array<i64: 1, 128>}, {pipeline_mode = #tpu.pipeline_mode<synchronous>, transform_indices = @transform_3, window_bounds = array<i64: 1, 128>}, {pipeline_mode = #tpu.pipeline_mode<synchronous>, transform_indices = @transform_4, window_bounds = array<i64: 1, 128>}, {transform_indices = @transform_5, window_bounds = array<i64: 128, 128>}, {transform_indices = @transform_6, window_bounds = array<i64: 1, 128>}, {transform_indices = @transform_7, window_bounds = array<i64: 8, 1>}, {transform_indices = @transform_8, window_bounds = array<i64: 8, 128>}, {transform_indices = @transform_9, window_bounds = array<i64: 1, 8, 128>}]} {
    %c0 = arith.constant 0 : index
    %0 = memref.load %arg2[%c0] : memref<1xi32, #tpu.memory_space<smem>>
    %c8_i32 = arith.constant 8 : i32
    %1 = arith.muli %arg0, %c8_i32 : i32
    %2 = arith.cmpi slt, %1, %0 : i32
    %c0_i32 = arith.constant 0 : i32
    %3 = arith.cmpi eq, %arg1, %c0_i32 : i32
    %4 = arith.andi %2, %3 : i1
    %5 = arith.extui %4 : i1 to i32
    %c0_i32_0 = arith.constant 0 : i32
    %6 = arith.cmpi ne, %5, %c0_i32_0 : i32
    scf.if %6 {
      %c0_3 = arith.constant 0 : index
      %c0_4 = arith.constant 0 : index
      %12 = vector.load %arg3[%c0_3, %c0_4] : memref<8x128xbf16, #tpu.memory_space<vmem>>, vector<8x128xbf16>
      %c0_5 = arith.constant 0 : index
      %c0_6 = arith.constant 0 : index
      %13 = vector.load %arg4[%c0_5, %c0_6] : memref<128x128xbf16, #tpu.memory_space<vmem>>, vector<128x128xbf16>
      %cst = arith.constant dense<0.000000e+00> : vector<8x128xf32>
      %14 = tpu.matmul %12, %13, %cst {dimension_numbers = #tpu.dot_dimension_numbers<[1], [0], [0], [1], [0, 0, 1, 1], [], []>} : vector<8x128xbf16>, vector<128x128xbf16>, vector<8x128xf32> -> vector<8x128xf32>
      %c0_7 = arith.constant 0 : index
      %c0_8 = arith.constant 0 : index
      %15 = vector.load %arg5[%c0_7, %c0_8] : memref<1x128xf32, #tpu.memory_space<vmem>>, vector<1x128xf32>
      %16 = vector.broadcast %15 : vector<1x128xf32> to vector<8x128xf32>
      %17 = arith.addf %14, %16 : vector<8x128xf32>
      %cst_9 = arith.constant 5.000000e-01 : f32
      %18 = vector.broadcast %cst_9 : f32 to vector<8x128xf32>
      %19 = arith.mulf %18, %17 : vector<8x128xf32>
      %cst_10 = arith.constant 0.707106769 : f32
      %20 = vector.broadcast %cst_10 : f32 to vector<8x128xf32>
      %21 = arith.mulf %17, %20 : vector<8x128xf32>
      %22 = math.erf %21 : vector<8x128xf32>
      %cst_11 = arith.constant 1.000000e+00 : f32
      %23 = vector.broadcast %cst_11 : f32 to vector<8x128xf32>
      %24 = arith.addf %23, %22 : vector<8x128xf32>
      %25 = arith.mulf %19, %24 : vector<8x128xf32>
      %cst_12 = arith.constant dense<0.000000e+00> : vector<8xf32>
      %26 = vector.multi_reduction <add>, %25, %cst_12 [1] : vector<8x128xf32> to vector<8xf32>
      %27 = vector.shape_cast %26 : vector<8xf32> to vector<8x1xf32>
      %cst_13 = arith.constant 1.280000e+02 : f32
      %28 = vector.broadcast %cst_13 : f32 to vector<8x1xf32>
      %29 = arith.divf %27, %28 : vector<8x1xf32>
      %30 = vector.broadcast %29 : vector<8x1xf32> to vector<8x128xf32>
      %31 = arith.subf %25, %30 : vector<8x128xf32>
      %32 = arith.mulf %31, %31 : vector<8x128xf32>
      %cst_14 = arith.constant dense<0.000000e+00> : vector<8xf32>
      %33 = vector.multi_reduction <add>, %32, %cst_14 [1] : vector<8x128xf32> to vector<8xf32>
      %34 = vector.shape_cast %33 : vector<8xf32> to vector<8x1xf32>
      %cst_15 = arith.constant 1.280000e+02 : f32
      %35 = vector.broadcast %cst_15 : f32 to vector<8x1xf32>
      %36 = arith.divf %34, %35 : vector<8x1xf32>
      %37 = vector.broadcast %29 : vector<8x1xf32> to vector<8x128xf32>
      %38 = arith.subf %25, %37 : vector<8x128xf32>
      %cst_16 = arith.constant 9.99999974E-6 : f32
      %39 = vector.broadcast %cst_16 : f32 to vector<8x1xf32>
      %40 = arith.addf %36, %39 : vector<8x1xf32>
      %41 = math.rsqrt %40 : vector<8x1xf32>
      %42 = vector.broadcast %41 : vector<8x1xf32> to vector<8x128xf32>
      %43 = arith.mulf %38, %42 : vector<8x128xf32>
      %c0_17 = arith.constant 0 : index
      %c0_18 = arith.constant 0 : index
      %44 = vector.load %arg6[%c0_17, %c0_18] : memref<1x128xf32, #tpu.memory_space<vmem>>, vector<1x128xf32>
      %45 = vector.broadcast %44 : vector<1x128xf32> to vector<8x128xf32>
      %46 = arith.mulf %43, %45 : vector<8x128xf32>
      %c0_19 = arith.constant 0 : index
      %c0_20 = arith.constant 0 : index
      %47 = vector.load %arg7[%c0_19, %c0_20] : memref<1x128xf32, #tpu.memory_space<vmem>>, vector<1x128xf32>
      %48 = vector.broadcast %47 : vector<1x128xf32> to vector<8x128xf32>
      %49 = arith.addf %46, %48 : vector<8x128xf32>
      %50 = arith.truncf %49 : vector<8x128xf32> to vector<8x128xbf16>
      %c0_21 = arith.constant 0 : index
      %c0_22 = arith.constant 0 : index
      %51 = vector.load %arg13[%c0_21, %c0_22] : memref<8x128xbf16, #tpu.memory_space<vmem>>, vector<8x128xbf16>
      tpu.vector_store %arg13[%c0_21, %c0_22], %50 {strides = array<i32>} : memref<8x128xbf16, #tpu.memory_space<vmem>>, vector<8x128xbf16>,
      %cst_23 = arith.constant 0xFF800000 : f32
      %52 = vector.broadcast %cst_23 : f32 to vector<8x1xf32>
      %c0_24 = arith.constant 0 : index
      %c0_25 = arith.constant 0 : index
      %53 = vector.load %arg14[%c0_24, %c0_25] : memref<8x1xf32, #tpu.memory_space<vmem>>, vector<8x1xf32>
      tpu.vector_store %arg14[%c0_24, %c0_25], %52 {strides = array<i32>} : memref<8x1xf32, #tpu.memory_space<vmem>>, vector<8x1xf32>,
      %cst_26 = arith.constant 0.000000e+00 : f32
      %54 = vector.broadcast %cst_26 : f32 to vector<8x1xf32>
      %c0_27 = arith.constant 0 : index
      %c0_28 = arith.constant 0 : index
      %55 = vector.load %arg15[%c0_27, %c0_28] : memref<8x1xf32, #tpu.memory_space<vmem>>, vector<8x1xf32>
      tpu.vector_store %arg15[%c0_27, %c0_28], %54 {strides = array<i32>} : memref<8x1xf32, #tpu.memory_space<vmem>>, vector<8x1xf32>,
      %cst_29 = arith.constant 0.000000e+00 : f32
      %56 = vector.broadcast %cst_29 : f32 to vector<8x1xf32>
      %c0_30 = arith.constant 0 : index
      %c0_31 = arith.constant 0 : index
      %57 = vector.load %arg16[%c0_30, %c0_31] : memref<8x1xf32, #tpu.memory_space<vmem>>, vector<8x1xf32>
      tpu.vector_store %arg16[%c0_30, %c0_31], %56 {strides = array<i32>} : memref<8x1xf32, #tpu.memory_space<vmem>>, vector<8x1xf32>,
    } else {
    }
    %7 = arith.extui %2 : i1 to i32
    %c0_i32_1 = arith.constant 0 : i32
    %8 = arith.cmpi ne, %7, %c0_i32_1 : i32
    scf.if %8 {
      %c0_3 = arith.constant 0 : index
      %c0_4 = arith.constant 0 : index
      %12 = vector.load %arg13[%c0_3, %c0_4] : memref<8x128xbf16, #tpu.memory_space<vmem>>, vector<8x128xbf16>
      %c0_5 = arith.constant 0 : index
      %c0_6 = arith.constant 0 : index
      %13 = vector.load %arg8[%c0_5, %c0_6] : memref<128x128xbf16, #tpu.memory_space<vmem>>, vector<128x128xbf16>
      %cst = arith.constant dense<0.000000e+00> : vector<8x128xf32>
      %14 = tpu.matmul %12, %13, %cst {dimension_numbers = #tpu.dot_dimension_numbers<[1], [0], [0], [1], [0, 0, 1, 1], [], []>} : vector<8x128xbf16>, vector<128x128xbf16>, vector<8x128xf32> -> vector<8x128xf32>
      %c0_7 = arith.constant 0 : index
      %c0_8 = arith.constant 0 : index
      %15 = vector.load %arg9[%c0_7, %c0_8] : memref<1x128xf32, #tpu.memory_space<vmem>>, vector<1x128xf32>
      %16 = vector.broadcast %15 : vector<1x128xf32> to vector<8x128xf32>
      %17 = arith.addf %14, %16 : vector<8x128xf32>
      %18 = arith.truncf %17 : vector<8x128xf32> to vector<8x128xbf16>
      %c0_9 = arith.constant 0 : index
      %c0_10 = arith.constant 0 : index
      %19 = vector.load %arg11[%c0_9, %c0_10] : memref<8x128xbf16, #tpu.memory_space<vmem>>, vector<8x128xbf16>
      tpu.vector_store %arg11[%c0_9, %c0_10], %18 {strides = array<i32>} : memref<8x128xbf16, #tpu.memory_space<vmem>>, vector<8x128xbf16>,
      %c0_11 = arith.constant 0 : index
      %c0_12 = arith.constant 0 : index
      %20 = vector.load %arg14[%c0_11, %c0_12] : memref<8x1xf32, #tpu.memory_space<vmem>>, vector<8x1xf32>
      %cst_13 = arith.constant dense<0xFF800000> : vector<8xf32>
      %21 = vector.multi_reduction <maximumf>, %17, %cst_13 [1] : vector<8x128xf32> to vector<8xf32>
      %22 = vector.shape_cast %21 : vector<8xf32> to vector<8x1xf32>
      %23 = arith.maximumf %20, %22 : vector<8x1xf32>
      %24 = arith.subf %20, %23 : vector<8x1xf32>
      %25 = math.exp %24 : vector<8x1xf32>
      %c0_14 = arith.constant 0 : index
      %c0_15 = arith.constant 0 : index
      %26 = vector.load %arg15[%c0_14, %c0_15] : memref<8x1xf32, #tpu.memory_space<vmem>>, vector<8x1xf32>
      %27 = arith.mulf %25, %26 : vector<8x1xf32>
      %28 = vector.broadcast %23 : vector<8x1xf32> to vector<8x128xf32>
      %29 = arith.subf %17, %28 : vector<8x128xf32>
      %30 = math.exp %29 : vector<8x128xf32>
      %cst_16 = arith.constant dense<0.000000e+00> : vector<8xf32>
      %31 = vector.multi_reduction <add>, %30, %cst_16 [1] : vector<8x128xf32> to vector<8xf32>
      %32 = vector.shape_cast %31 : vector<8xf32> to vector<8x1xf32>
      %33 = arith.addf %27, %32 : vector<8x1xf32>
      %c0_17 = arith.constant 0 : index
      %c0_18 = arith.constant 0 : index
      %34 = vector.load %arg15[%c0_17, %c0_18] : memref<8x1xf32, #tpu.memory_space<vmem>>, vector<8x1xf32>
      tpu.vector_store %arg15[%c0_17, %c0_18], %33 {strides = array<i32>} : memref<8x1xf32, #tpu.memory_space<vmem>>, vector<8x1xf32>,
      %c0_19 = arith.constant 0 : index
      %c0_20 = arith.constant 0 : index
      %35 = vector.load %arg14[%c0_19, %c0_20] : memref<8x1xf32, #tpu.memory_space<vmem>>, vector<8x1xf32>
      tpu.vector_store %arg14[%c0_19, %c0_20], %23 {strides = array<i32>} : memref<8x1xf32, #tpu.memory_space<vmem>>, vector<8x1xf32>,
      %36 = tpu.iota {dimensions = array<i32: 1>} : vector<8x128xi32>
      %c0_21 = arith.constant 0 : index
      %c0_22 = arith.constant 0 : index
      %37 = vector.load %arg10[%c0_21, %c0_22] : memref<8x1xi32, #tpu.memory_space<vmem>>, vector<8x1xi32>
      %c128_i32 = arith.constant 128 : i32
      %38 = arith.muli %arg1, %c128_i32 : i32
      %39 = vector.broadcast %38 : i32 to vector<8x1xi32>
      %40 = arith.subi %37, %39 : vector<8x1xi32>
      %c0_23 = arith.constant 0 : index
      %c0_24 = arith.constant 0 : index
      %41 = vector.load %arg16[%c0_23, %c0_24] : memref<8x1xf32, #tpu.memory_space<vmem>>, vector<8x1xf32>
      %42 = vector.broadcast %40 : vector<8x1xi32> to vector<8x128xi32>
      %43 = arith.cmpi eq, %36, %42 : vector<8x128xi32>
      %cst_25 = arith.constant 0.000000e+00 : f32
      %44 = vector.broadcast %cst_25 : f32 to vector<8x128xf32>
      %45 = arith.select %43, %17, %44 : vector<8x128xi1>, vector<8x128xf32>
      %cst_26 = arith.constant dense<0.000000e+00> : vector<8xf32>
      %46 = vector.multi_reduction <add>, %45, %cst_26 [1] : vector<8x128xf32> to vector<8xf32>
      %47 = vector.shape_cast %46 : vector<8xf32> to vector<8x1xf32>
      %48 = arith.addf %41, %47 : vector<8x1xf32>
      %c0_27 = arith.constant 0 : index
      %c0_28 = arith.constant 0 : index
      %49 = vector.load %arg16[%c0_27, %c0_28] : memref<8x1xf32, #tpu.memory_space<vmem>>, vector<8x1xf32>
      tpu.vector_store %arg16[%c0_27, %c0_28], %48 {strides = array<i32>} : memref<8x1xf32, #tpu.memory_space<vmem>>, vector<8x1xf32>,
    } else {
    }
    %c2_i32 = arith.constant 2 : i32
    %9 = arith.cmpi eq, %arg1, %c2_i32 : i32
    %10 = arith.extui %9 : i1 to i32
    %c0_i32_2 = arith.constant 0 : i32
    %11 = arith.cmpi ne, %10, %c0_i32_2 : i32
    scf.if %11 {
      %c0_3 = arith.constant 0 : index
      %c0_4 = arith.constant 0 : index
      %12 = vector.load %arg14[%c0_3, %c0_4] : memref<8x1xf32, #tpu.memory_space<vmem>>, vector<8x1xf32>
      %c0_5 = arith.constant 0 : index
      %c0_6 = arith.constant 0 : index
      %13 = vector.load %arg15[%c0_5, %c0_6] : memref<8x1xf32, #tpu.memory_space<vmem>>, vector<8x1xf32>
      %14 = math.log %13 : vector<8x1xf32>
      %15 = arith.addf %12, %14 : vector<8x1xf32>
      %c0_7 = arith.constant 0 : index
      %c0_8 = arith.constant 0 : index
      %16 = vector.load %arg16[%c0_7, %c0_8] : memref<8x1xf32, #tpu.memory_space<vmem>>, vector<8x1xf32>
      %17 = arith.subf %15, %16 : vector<8x1xf32>
      %18 = tpu.iota {dimensions = array<i32: 0>} : vector<8x1xi32>
      %c8_i32_9 = arith.constant 8 : i32
      %19 = arith.muli %arg0, %c8_i32_9 : i32
      %20 = vector.broadcast %19 : i32 to vector<8x1xi32>
      %21 = arith.addi %18, %20 : vector<8x1xi32>
      %22 = vector.broadcast %0 : i32 to vector<8x1xi32>
      %23 = arith.cmpi slt, %21, %22 : vector<8x1xi32>
      %24 = arith.extui %23 : vector<8x1xi1> to vector<8x1xi32>
      %25 = arith.sitofp %24 : vector<8x1xi32> to vector<8x1xf32>
      %26 = arith.mulf %17, %25 : vector<8x1xf32>
      %27 = vector.shape_cast %26 : vector<8x1xf32> to vector<1x8x1xf32>
      %cst = arith.constant dense<0.000000e+00> : vector<1xf32>
      %28 = vector.multi_reduction <add>, %27, %cst [1, 2] : vector<1x8x1xf32> to vector<1xf32>
      %29 = vector.shape_cast %28 : vector<1xf32> to vector<1x1x1xf32>
      %30 = vector.extract %29[0, 0, 0] : f32 from vector<1x1x1xf32>
      %cst_10 = arith.constant 0.000000e+00 : f32
      %31 = arith.select %2, %30, %cst_10 : f32
      %32 = vector.broadcast %31 : f32 to vector<1x8x128xf32>
      %c0_11 = arith.constant 0 : index
      %c0_12 = arith.constant 0 : index
      %c0_13 = arith.constant 0 : index
      %33 = vector.load %arg12[%c0_11, %c0_12, %c0_13] : memref<1x8x128xf32, #tpu.memory_space<vmem>>, vector<1x8x128xf32>
      tpu.vector_store %arg12[%c0_11, %c0_12, %c0_13], %32 {strides = array<i32>} : memref<1x8x128xf32, #tpu.memory_space<vmem>>, vector<1x8x128xf32>,
    } else {
    }
    return
  }
  func.func @transform_0(%arg0: i32, %arg1: i32, %arg2: memref<1xi32, #tpu.memory_space<smem>>) -> (i32, i32) {
    %c0_i32 = arith.constant 0 : i32
    %c0_i32_0 = arith.constant 0 : i32
    return %arg0, %c0_i32 : i32, i32
  }
  func.func @transform_1(%arg0: i32, %arg1: i32, %arg2: memref<1xi32, #tpu.memory_space<smem>>) -> (i32, i32) {
    %c0_i32 = arith.constant 0 : i32
    %c0_i32_0 = arith.constant 0 : i32
    %c0_i32_1 = arith.constant 0 : i32
    return %c0_i32, %c0_i32_0 : i32, i32
  }
  func.func @transform_2(%arg0: i32, %arg1: i32, %arg2: memref<1xi32, #tpu.memory_space<smem>>) -> (i32, i32) {
    %c0_i32 = arith.constant 0 : i32
    %c0_i32_0 = arith.constant 0 : i32
    %c0_i32_1 = arith.constant 0 : i32
    return %c0_i32, %c0_i32_0 : i32, i32
  }
  func.func @transform_3(%arg0: i32, %arg1: i32, %arg2: memref<1xi32, #tpu.memory_space<smem>>) -> (i32, i32) {
    %c0_i32 = arith.constant 0 : i32
    %c0_i32_0 = arith.constant 0 : i32
    %c0_i32_1 = arith.constant 0 : i32
    return %c0_i32, %c0_i32_0 : i32, i32
  }
  func.func @transform_4(%arg0: i32, %arg1: i32, %arg2: memref<1xi32, #tpu.memory_space<smem>>) -> (i32, i32) {
    %c0_i32 = arith.constant 0 : i32
    %c0_i32_0 = arith.constant 0 : i32
    %c0_i32_1 = arith.constant 0 : i32
    return %c0_i32, %c0_i32_0 : i32, i32
  }
  func.func @transform_5(%arg0: i32, %arg1: i32, %arg2: memref<1xi32, #tpu.memory_space<smem>>) -> (i32, i32) {
    %c8_i32 = arith.constant 8 : i32
    %0 = arith.muli %arg0, %c8_i32 : i32
    %c0 = arith.constant 0 : index
    %1 = memref.load %arg2[%c0] : memref<1xi32, #tpu.memory_space<smem>>
    %2 = arith.cmpi slt, %0, %1 : i32
    %3 = arith.extui %2 : i1 to i32
    %4 = arith.muli %arg1, %3 : i32
    %c0_i32 = arith.constant 0 : i32
    %c0_i32_0 = arith.constant 0 : i32
    return %c0_i32, %4 : i32, i32
  }
  func.func @transform_6(%arg0: i32, %arg1: i32, %arg2: memref<1xi32, #tpu.memory_space<smem>>) -> (i32, i32) {
    %c8_i32 = arith.constant 8 : i32
    %0 = arith.muli %arg0, %c8_i32 : i32
    %c0 = arith.constant 0 : index
    %1 = memref.load %arg2[%c0] : memref<1xi32, #tpu.memory_space<smem>>
    %2 = arith.cmpi slt, %0, %1 : i32
    %3 = arith.extui %2 : i1 to i32
    %4 = arith.muli %arg1, %3 : i32
    %c0_i32 = arith.constant 0 : i32
    %c0_i32_0 = arith.constant 0 : i32
    return %c0_i32, %4 : i32, i32
  }
  func.func @transform_7(%arg0: i32, %arg1: i32, %arg2: memref<1xi32, #tpu.memory_space<smem>>) -> (i32, i32) {
    %c0_i32 = arith.constant 0 : i32
    %c0_i32_0 = arith.constant 0 : i32
    return %arg0, %c0_i32 : i32, i32
  }
  func.func @transform_8(%arg0: i32, %arg1: i32, %arg2: memref<1xi32, #tpu.memory_space<smem>>) -> (i32, i32) {
    %c8_i32 = arith.constant 8 : i32
    %0 = arith.muli %arg0, %c8_i32 : i32
    %c0 = arith.constant 0 : index
    %1 = memref.load %arg2[%c0] : memref<1xi32, #tpu.memory_space<smem>>
    %2 = arith.cmpi slt, %0, %1 : i32
    %3 = arith.extui %2 : i1 to i32
    %4 = arith.muli %arg1, %3 : i32
    %c0_i32 = arith.constant 0 : i32
    return %arg0, %4 : i32, i32
  }
  func.func @transform_9(%arg0: i32, %arg1: i32, %arg2: memref<1xi32, #tpu.memory_space<smem>>) -> (i32, i32, i32) {
    %c0_i32 = arith.constant 0 : i32
    %c0_i32_0 = arith.constant 0 : i32
    %c0_i32_1 = arith.constant 0 : i32
    return %arg0, %c0_i32, %c0_i32_0 : i32, i32, i32
  }
}

</mosaic_0001>

<llo_original>
// kernel: _masked_prediction_forward.1
$region0: #{_masked_prediction_forward.1}
  #allocation0 [shape = 'u32[]', space=smem, size = 0x4, offset = 0x4, fixed_abs, tag = 'smem constant byte address 0x4 - core index']
  #allocation1 [shape = 'u32[144,128]{1,0:T(1,128)}', space=vmem, size = 0x12000, scoped, tag = 'internal scratch']
  #allocation2 [shape = 'bf16[8,128]{1,0:T(8,128)(2,1)}', space=vmem, size = 0x800, scoped, tag = 'scratch operand']
  #allocation3 [shape = 'f32[8,1]{1,0:T(8,128)}', space=vmem, size = 0x1000, scoped, tag = 'scratch operand']
  #allocation4 [shape = 'f32[8,1]{1,0:T(8,128)}', space=vmem, size = 0x1000, scoped, tag = 'scratch operand']
  #allocation5 [shape = 'f32[8,1]{1,0:T(8,128)}', space=vmem, size = 0x1000, scoped, tag = 'scratch operand']
  #allocation6 [shape = 's32[1]{0}', space=sflag, size = 0x4, scoped, tag = 'scoped memory for _masked_prediction_forward.1']
  #allocation7 [shape = 's32[1]{0:T(128)S(6)}', space=smem, size = 0x200, scoped, tag = 'prefetched SMEM operand 0']
  %s0 = inlined_call_operand.<no memory space> [shape: s32[1], index: 0, kind: input, shape index: {}]
  %s1 = inlined_call_operand.vmem [shape: bf16[16,128], index: 1, kind: input, shape index: {}]
  %s2 = inlined_call_operand.vmem [shape: bf16[128,128], index: 2, kind: input, shape index: {}]
  %s3 = inlined_call_operand.vmem [shape: f32[1,128], index: 3, kind: input, shape index: {}]
  %s4 = inlined_call_operand.vmem [shape: f32[1,128], index: 4, kind: input, shape index: {}]
  %s5 = inlined_call_operand.vmem [shape: f32[1,128], index: 5, kind: input, shape index: {}]
  %s6 = inlined_call_operand.vmem [shape: bf16[128,384], index: 6, kind: input, shape index: {}]
  %s7 = inlined_call_operand.vmem [shape: f32[1,384], index: 7, kind: input, shape index: {}]
  %s8 = inlined_call_operand.vmem [shape: s32[16,1], index: 8, kind: input, shape index: {}]
  %s9 = inlined_call_operand.hbm [shape: bf16[16,384], index: 9, kind: output, shape index: {0}]
  %s10 = inlined_call_operand.vmem [shape: f32[2,8,128], index: 10, kind: output, shape index: {1}]
  %11 = xla_tuple %s9, %s10
  %s12 = sld [smem:[#allocation0]]
  $region126: #{_masked_prediction_forward.1} parent=0
    _
  %s14 = ssub.s32 1, %s12
  %s15 = scalar_select 0, %s14, %s12
  %16 = sst [smem:[#allocation7]] %s0
  $region1: #{_masked_prediction_forward.1} parent=0
    #allocation8 [shape = 'u8[65536]{0}', space=vmem, size = 0x10000, scoped, tag = 'input window, operand 6']
    #allocation9 [shape = 'u8[4096]{0}', space=vmem, size = 0x1000, scoped, tag = 'output window, operand 0']
    #allocation10 [shape = 's32[2]{0}', space=sflag, size = 0x8, scoped, tag = 'scoped memory for _masked_prediction_forward.1']
    %17 = vsyncpa [#allocation10], 0
    %s18 = scalar_lea.sflag [#allocation10], 1
    %19 = vsyncpa %s18, 0
    loop: start=0, step=1, limit=8
    $region2: #{_masked_prediction_forward.1} parent=1 // loop_pre_header
      _
    $region3: #{_masked_prediction_forward.1} parent=1 // loop_header
      %s21 = sphi 0, %s25
      %p22 = scmp.ge.s32.totalorder %s21, 8
      %s28 = sphi 0, %s40
      %s29 = sphi 0, %s36
      %s30 = sphi 0, %s28
      %s31 = sphi 0, %s29
      %s32 = sphi 0, %s30
      %s33 = sphi 0, %s31
      %s43 = sphi 0, %s45
      %s46 = sphi 0, %s43
      %s47 = sphi 0, %s46
      %s63 = sphi 0, %s47
      %s67 = sphi 0, %s67
      %s69 = sphi 0, %s67
      %s70 = sphi 0, %s69
      %s84 = sphi 0, %s70
      %s88 = sphi 0, %s88
      %s90 = sphi 0, %s88
      %s91 = sphi 0, %s90
      %s105 = sphi 0, %s91
      %s109 = sphi 0, %s109
      %s111 = sphi 0, %s109
      %s112 = sphi 0, %s111
      %s126 = sphi 0, %s112
      %s130 = sphi 0, %s130
      %s132 = sphi 0, %s130
      %s133 = sphi 0, %s132
      %s147 = sphi 0, %s133
      %s163 = sphi 0, %s165
      %s166 = sphi 0, %s163
      %s167 = sphi 0, %s166
      %s183 = sphi 0, %s167
      %s199 = sphi 0, %s201
      %s202 = sphi 0, %s199
      %s203 = sphi 0, %s202
      %s219 = sphi 0, %s203
      %s225 = sphi 0, %s227
      %s228 = sphi 0, %s225
      %s229 = sphi 0, %s228
      %s245 = sphi 0, %s229
      %s263 = sphi 0, %s265
      %s266 = sphi 0, %s263
      %s267 = sphi 0, %s266
      %s283 = sphi 0, %s267
      %s289 = sphi 0, %s291
      %s292 = sphi 0, %s289
      %s293 = sphi 0, %s292
      %s309 = sphi 0, %s293
    $region4: #{_masked_prediction_forward.1} parent=1 // loop_header_branch
      %24 = sbr.rel (%p22) target = $region8
    $region5: #{_masked_prediction_forward.1} parent=1 // loop_body
      %s26 = ssub.s32 %s21, 1
      %s27 = ssub.s32 %s21, 2
      %s34 = sadd.s32 1, %s29
      %p35 = scmp.ge.s32.totalorder %s34, 3
      %s36 = scalar_select %p35, 0, %s34
      %s37 = sadd.s32 1, %s28
      %s38 = scalar_select %p35, %s37, %s28
      %p39 = scmp.ge.s32.totalorder %s38, 2
      %s40 = scalar_select %p39, 0, %s38
      %s41 = ssub.s32 %s28, %s40
      %p42 = scmp.eq.s32.totalorder %s41, 0
      %s44 = sadd.s32 %s43, 1
      %s45 = scalar_select %p42, %s43, %s44
      %p48 = pneg %p42
      %p49 = scmp.eq.s32.totalorder %s21, 5
      %p50 = por %p48, %p49
      %p51 = scmp.ne.s32.totalorder %s43, %s46
      %p52 = scmp.eq.s32.totalorder %s21, 0
      %p53 = por %p51, %p52
      %p54 = scmp.ne.s32.totalorder %s43, %s46
      %p55 = scmp.eq.s32.totalorder %s26, 5
      %p56 = por %p54, %p55
      %p57 = scmp.ne.s32.totalorder %s46, %s47
      %p58 = scmp.eq.s32.totalorder %s26, 0
      %p59 = por %p57, %p58
      %p60 = scmp.ne.s32.totalorder %s46, %s47
      %p61 = scmp.eq.s32.totalorder %s27, 5
      %p62 = por %p60, %p61
      %p64 = scmp.ne.s32.totalorder %s47, %s63
      %p65 = scmp.eq.s32.totalorder %s27, 0
      %p66 = por %p64, %p65
      %s68 = sadd.s32 %s67, 1
      %p71 = scmp.eq.s32.totalorder %s21, 5
      %p72 = scmp.ne.s32.totalorder %s67, %s69
      %p73 = scmp.eq.s32.totalorder %s21, 0
      %p74 = por %p72, %p73
      %p75 = scmp.ne.s32.totalorder %s67, %s69
      %p76 = scmp.eq.s32.totalorder %s26, 5
      %p77 = por %p75, %p76
      %p78 = scmp.ne.s32.totalorder %s69, %s70
      %p79 = scmp.eq.s32.totalorder %s26, 0
      %p80 = por %p78, %p79
      %p81 = scmp.ne.s32.totalorder %s69, %s70
      %p82 = scmp.eq.s32.totalorder %s27, 5
      %p83 = por %p81, %p82
      %p85 = scmp.ne.s32.totalorder %s70, %s84
      %p86 = scmp.eq.s32.totalorder %s27, 0
      %p87 = por %p85, %p86
      %s89 = sadd.s32 %s88, 1
      %p92 = scmp.eq.s32.totalorder %s21, 5
      %p93 = scmp.ne.s32.totalorder %s88, %s90
      %p94 = scmp.eq.s32.totalorder %s21, 0
      %p95 = por %p93, %p94
      %p96 = scmp.ne.s32.totalorder %s88, %s90
      %p97 = scmp.eq.s32.totalorder %s26, 5
      %p98 = por %p96, %p97
      %p99 = scmp.ne.s32.totalorder %s90, %s91
      %p100 = scmp.eq.s32.totalorder %s26, 0
      %p101 = por %p99, %p100
      %p102 = scmp.ne.s32.totalorder %s90, %s91
      %p103 = scmp.eq.s32.totalorder %s27, 5
      %p104 = por %p102, %p103
      %p106 = scmp.ne.s32.totalorder %s91, %s105
      %p107 = scmp.eq.s32.totalorder %s27, 0
      %p108 = por %p106, %p107
      %s110 = sadd.s32 %s109, 1
      %p113 = scmp.eq.s32.totalorder %s21, 5
      %p114 = scmp.ne.s32.totalorder %s109, %s111
      %p115 = scmp.eq.s32.totalorder %s21, 0
      %p116 = por %p114, %p115
      %p117 = scmp.ne.s32.totalorder %s109, %s111
      %p118 = scmp.eq.s32.totalorder %s26, 5
      %p119 = por %p117, %p118
      %p120 = scmp.ne.s32.totalorder %s111, %s112
      %p121 = scmp.eq.s32.totalorder %s26, 0
      %p122 = por %p120, %p121
      %p123 = scmp.ne.s32.totalorder %s111, %s112
      %p124 = scmp.eq.s32.totalorder %s27, 5
      %p125 = por %p123, %p124
      %p127 = scmp.ne.s32.totalorder %s112, %s126
      %p128 = scmp.eq.s32.totalorder %s27, 0
      %p129 = por %p127, %p128
      %s131 = sadd.s32 %s130, 1
      %p134 = scmp.eq.s32.totalorder %s21, 5
      %p135 = scmp.ne.s32.totalorder %s130, %s132
      %p136 = scmp.eq.s32.totalorder %s21, 0
      %p137 = por %p135, %p136
      %p138 = scmp.ne.s32.totalorder %s130, %s132
      %p139 = scmp.eq.s32.totalorder %s26, 5
      %p140 = por %p138, %p139
      %p141 = scmp.ne.s32.totalorder %s132, %s133
      %p142 = scmp.eq.s32.totalorder %s26, 0
      %p143 = por %p141, %p142
      %p144 = scmp.ne.s32.totalorder %s132, %s133
      %p145 = scmp.eq.s32.totalorder %s27, 5
      %p146 = por %p144, %p145
      %p148 = scmp.ne.s32.totalorder %s133, %s147
      %p149 = scmp.eq.s32.totalorder %s27, 0
      %p150 = por %p148, %p149
      %s151 = smul.u32 %s28, 8
      %s152 = sld [smem:[#allocation7]]
      %p153 = scmp.lt.s32.totalorder %s151, %s152
      %s154 = scalar_select %p153, 1, 0
      %s155 = smul.u32 %s29, %s154
      %s156 = smul.u32 %s40, 8
      %s157 = sld [smem:[#allocation7]]
      %p158 = scmp.lt.s32.totalorder %s156, %s157
      %s159 = scalar_select %p158, 1, 0
      %s160 = smul.u32 %s36, %s159
      %s161 = ssub.s32 %s155, %s160
      %p162 = scmp.eq.s32.totalorder %s161, 0
      %s164 = sadd.s32 %s163, 1
      %s165 = scalar_select %p162, %s163, %s164
      %p168 = pneg %p162
      %p169 = scmp.eq.s32.totalorder %s21, 5
      %p170 = por %p168, %p169
      %p171 = scmp.ne.s32.totalorder %s163, %s166
      %p172 = scmp.eq.s32.totalorder %s21, 0
      %p173 = por %p171, %p172
      %p174 = scmp.ne.s32.totalorder %s163, %s166
      %p175 = scmp.eq.s32.totalorder %s26, 5
      %p176 = por %p174, %p175
      %p177 = scmp.ne.s32.totalorder %s166, %s167
      %p178 = scmp.eq.s32.totalorder %s26, 0
      %p179 = por %p177, %p178
      %p180 = scmp.ne.s32.totalorder %s166, %s167
      %p181 = scmp.eq.s32.totalorder %s27, 5
      %p182 = por %p180, %p181
      %p184 = scmp.ne.s32.totalorder %s167, %s183
      %p185 = scmp.eq.s32.totalorder %s27, 0
      %p186 = por %p184, %p185
      %s187 = smul.u32 %s28, 8
      %s188 = sld [smem:[#allocation7]]
      %p189 = scmp.lt.s32.totalorder %s187, %s188
      %s190 = scalar_select %p189, 1, 0
      %s191 = smul.u32 %s29, %s190
      %s192 = smul.u32 %s40, 8
      %s193 = sld [smem:[#allocation7]]
      %p194 = scmp.lt.s32.totalorder %s192, %s193
      %s195 = scalar_select %p194, 1, 0
      %s196 = smul.u32 %s36, %s195
      %s197 = ssub.s32 %s191, %s196
      %p198 = scmp.eq.s32.totalorder %s197, 0
      %s200 = sadd.s32 %s199, 1
      %s201 = scalar_select %p198, %s199, %s200
      %p204 = pneg %p198
      %p205 = scmp.eq.s32.totalorder %s21, 5
      %p206 = por %p204, %p205
      %p207 = scmp.ne.s32.totalorder %s199, %s202
      %p208 = scmp.eq.s32.totalorder %s21, 0
      %p209 = por %p207, %p208
      %p210 = scmp.ne.s32.totalorder %s199, %s202
      %p211 = scmp.eq.s32.totalorder %s26, 5
      %p212 = por %p210, %p211
      %p213 = scmp.ne.s32.totalorder %s202, %s203
      %p214 = scmp.eq.s32.totalorder %s26, 0
      %p215 = por %p213, %p214
      %p216 = scmp.ne.s32.totalorder %s202, %s203
      %p217 = scmp.eq.s32.totalorder %s27, 5
      %p218 = por %p216, %p217
      %p220 = scmp.ne.s32.totalorder %s203, %s219
      %p221 = scmp.eq.s32.totalorder %s27, 0
      %p222 = por %p220, %p221
      %s223 = ssub.s32 %s28, %s40
      %p224 = scmp.eq.s32.totalorder %s223, 0
      %s226 = sadd.s32 %s225, 1
      %s227 = scalar_select %p224, %s225, %s226
      %p230 = pneg %p224
      %p231 = scmp.eq.s32.totalorder %s21, 5
      %p232 = por %p230, %p231
      %p233 = scmp.ne.s32.totalorder %s225, %s228
      %p234 = scmp.eq.s32.totalorder %s21, 0
      %p235 = por %p233, %p234
      %p236 = scmp.ne.s32.totalorder %s225, %s228
      %p237 = scmp.eq.s32.totalorder %s26, 5
      %p238 = por %p236, %p237
      %p239 = scmp.ne.s32.totalorder %s228, %s229
      %p240 = scmp.eq.s32.totalorder %s26, 0
      %p241 = por %p239, %p240
      %p242 = scmp.ne.s32.totalorder %s228, %s229
      %p243 = scmp.eq.s32.totalorder %s27, 5
      %p244 = por %p242, %p243
      %p246 = scmp.ne.s32.totalorder %s229, %s245
      %p247 = scmp.eq.s32.totalorder %s27, 0
      %p248 = por %p246, %p247
      %s249 = smul.u32 %s28, 8
      %s250 = sld [smem:[#allocation7]]
      %p251 = scmp.lt.s32.totalorder %s249, %s250
      %s252 = scalar_select %p251, 1, 0
      %s253 = smul.u32 %s29, %s252
      %s254 = smul.u32 %s40, 8
      %s255 = sld [smem:[#allocation7]]
      %p256 = scmp.lt.s32.totalorder %s254, %s255
      %s257 = scalar_select %p256, 1, 0
      %s258 = smul.u32 %s36, %s257
      %s259 = ssub.s32 %s28, %s40
      %s260 = ssub.s32 %s253, %s258
      %s261 = sor.u32 %s259, %s260
      %p262 = scmp.eq.s32.totalorder %s261, 0
      %s264 = sadd.s32 %s263, 1
      %s265 = scalar_select %p262, %s263, %s264
      %p268 = pneg %p262
      %p269 = scmp.eq.s32.totalorder %s21, 5
      %p270 = por %p268, %p269
      %p271 = scmp.ne.s32.totalorder %s263, %s266
      %p272 = scmp.eq.s32.totalorder %s21, 0
      %p273 = por %p271, %p272
      %p274 = scmp.ne.s32.totalorder %s263, %s266
      %p275 = scmp.eq.s32.totalorder %s26, 5
      %p276 = por %p274, %p275
      %p277 = scmp.ne.s32.totalorder %s266, %s267
      %p278 = scmp.eq.s32.totalorder %s26, 0
      %p279 = por %p277, %p278
      %p280 = scmp.ne.s32.totalorder %s266, %s267
      %p281 = scmp.eq.s32.totalorder %s27, 5
      %p282 = por %p280, %p281
      %p284 = scmp.ne.s32.totalorder %s267, %s283
      %p285 = scmp.eq.s32.totalorder %s27, 0
      %p286 = por %p284, %p285
      %s287 = ssub.s32 %s28, %s40
      %p288 = scmp.eq.s32.totalorder %s287, 0
      %s290 = sadd.s32 %s289, 1
      %s291 = scalar_select %p288, %s289, %s290
      %p294 = pneg %p288
      %p295 = scmp.eq.s32.totalorder %s21, 5
      %p296 = por %p294, %p295
      %p297 = scmp.ne.s32.totalorder %s289, %s292
      %p298 = scmp.eq.s32.totalorder %s21, 0
      %p299 = por %p297, %p298
      %p300 = scmp.ne.s32.totalorder %s289, %s292
      %p301 = scmp.eq.s32.totalorder %s26, 5
      %p302 = por %p300, %p301
      %p303 = scmp.ne.s32.totalorder %s292, %s293
      %p304 = scmp.eq.s32.totalorder %s26, 0
      %p305 = por %p303, %p304
      %p306 = scmp.ne.s32.totalorder %s292, %s293
      %p307 = scmp.eq.s32.totalorder %s27, 5
      %p308 = por %p306, %p307
      %p310 = scmp.ne.s32.totalorder %s293, %s309
      %p311 = scmp.eq.s32.totalorder %s27, 0
      %p312 = por %p310, %p311
      %p313 = scmp.le.s32.totalorder 1, %s21
      %p314 = scmp.lt.s32.totalorder %s21, 7
      %p315 = pnand %p313, %p314
      %p316 = pneg %p315
      // Predicated region
      $region9: #{_masked_prediction_forward.1} parent=5 // pred_check
        _
      $region10: #{_masked_prediction_forward.1} parent=5 // pred_check_branch
        %318 = sbr.rel (%p315) target = $region12
      $region11: #{_masked_prediction_forward.1} parent=5 // pred_region
        %s319 = ssub.s32 %s21, 1
        // Predicated region
        $region13: #{_masked_prediction_forward.1} parent=11 // pred_check
          %p320 = pneg %p80
        $region14: #{_masked_prediction_forward.1} parent=11 // pred_check_branch
          %322 = sbr.rel (%p320) target = $region16
        $region15: #{_masked_prediction_forward.1} parent=11 // pred_region
          _
        $region16: #{_masked_prediction_forward.1} parent=11 // pred_fallthru
          _
        // Predicated region
        $region17: #{_masked_prediction_forward.1} parent=11 // pred_check
          %p323 = pneg %p101
        $region18: #{_masked_prediction_forward.1} parent=11 // pred_check_branch
          %325 = sbr.rel (%p323) target = $region20
        $region19: #{_masked_prediction_forward.1} parent=11 // pred_region
          _
        $region20: #{_masked_prediction_forward.1} parent=11 // pred_fallthru
          _
        // Predicated region
        $region21: #{_masked_prediction_forward.1} parent=11 // pred_check
          %p326 = pneg %p122
        $region22: #{_masked_prediction_forward.1} parent=11 // pred_check_branch
          %328 = sbr.rel (%p326) target = $region24
        $region23: #{_masked_prediction_forward.1} parent=11 // pred_region
          _
        $region24: #{_masked_prediction_forward.1} parent=11 // pred_fallthru
          _
        // Predicated region
        $region25: #{_masked_prediction_forward.1} parent=11 // pred_check
          %p329 = pneg %p143
        $region26: #{_masked_prediction_forward.1} parent=11 // pred_check_branch
          %331 = sbr.rel (%p329) target = $region28
        $region27: #{_masked_prediction_forward.1} parent=11 // pred_region
          _
        $region28: #{_masked_prediction_forward.1} parent=11 // pred_fallthru
          _
      $region12: #{_masked_prediction_forward.1} parent=5 // pred_fallthru
        _
      %p332 = scmp.lt.s32.totalorder %s21, 6
      // Predicated region
      $region29: #{_masked_prediction_forward.1} parent=5 // pred_check
        %p333 = pneg %p332
      $region30: #{_masked_prediction_forward.1} parent=5 // pred_check_branch
        %335 = sbr.rel (%p333) target = $region32
      $region31: #{_masked_prediction_forward.1} parent=5 // pred_region
        // Predicated region
        $region33: #{_masked_prediction_forward.1} parent=31 // pred_check
          %p336 = pneg %p53
        $region34: #{_masked_prediction_forward.1} parent=31 // pred_check_branch
          %338 = sbr.rel (%p336) target = $region36
        $region35: #{_masked_prediction_forward.1} parent=31 // pred_region
          %p339 = scmp.lt.s32.totalorder %s28, 1
          %s340 = scalar_select %p339, %s28, 1
          %s341 = smul.addr %s340, 4
          %s342 = scalar_lea.vmem %s1, %s341
        $region36: #{_masked_prediction_forward.1} parent=31 // pred_fallthru
          _
        // Predicated region
        $region37: #{_masked_prediction_forward.1} parent=31 // pred_check
          %p343 = pneg %p173
        $region38: #{_masked_prediction_forward.1} parent=31 // pred_check_branch
          %345 = sbr.rel (%p343) target = $region40
        $region39: #{_masked_prediction_forward.1} parent=31 // pred_region
          %s346 = sand.u32 %s163, 1
          %s347 = sand.u32 %s163, 1
          %s348 = smul.addr %s347, 64
          %s349 = scalar_lea.vmem [#allocation8], %s348
          %s350 = smul.u32 %s28, 8
          %s351 = sld [smem:[#allocation7]]
          %p352 = scmp.lt.s32.totalorder %s350, %s351
          %s353 = scalar_select %p352, 1, 0
          %s354 = smul.u32 %s29, %s353
          %s355 = smul.addr %s354, 4
          %s356 = scalar_lea.vmem %s6, %s355
          // Predicated region
          $region41: #{_masked_prediction_forward.1} parent=39 // pred_check
            _
          $region42: #{_masked_prediction_forward.1} parent=39 // pred_check_branch
            %358 = sbr.rel (0) target = $region44
          $region43: #{_masked_prediction_forward.1} parent=39 // pred_region
            // Predicated region
            $region45: #{_masked_prediction_forward.1} parent=43 // pred_check
              _
            $region46: #{_masked_prediction_forward.1} parent=43 // pred_check_branch
              %360 = sbr.rel target = $region48
            $region47: #{_masked_prediction_forward.1} parent=43 // pred_region
              // Predicated region
              $region60: #{_masked_prediction_forward.1} parent=47 // pred_check
                _
              $region61: #{_masked_prediction_forward.1} parent=47 // pred_check_branch
                %405 = sbr.rel (0) target = $region63
              $region62: #{_masked_prediction_forward.1} parent=47 // pred_region
                loop: start=0, step=1, limit=1
                $region64: #{_masked_prediction_forward.1} parent=62 // loop_pre_header
                  _
                $region65: #{_masked_prediction_forward.1} parent=62 // loop_header
                  %s407 = sphi 0, %s411
                  %p408 = scmp.ge.s32.totalorder %s407, 1
                  %s412 = sphi %s356, %s356
                  %s413 = sphi %s349, %s349
                $region66: #{_masked_prediction_forward.1} parent=62 // loop_header_branch
                  %410 = sbr.rel (%p408) target = $region70
                $region67: #{_masked_prediction_forward.1} parent=62 // loop_body
                  _
                $region68: #{_masked_prediction_forward.1} parent=62 // loop_footer
                  %s411 = sadd.s32 1, %s407
                $region69: #{_masked_prediction_forward.1} parent=62 // loop_footer_branch
                  %406 = sbr.rel target = $region65
                $region70: #{_masked_prediction_forward.1} parent=62 // loop_exit
                  _
                loop: start=0, step=1, limit=1
                $region71: #{_masked_prediction_forward.1} parent=62 // loop_pre_header
                  _
                $region72: #{_masked_prediction_forward.1} parent=62 // loop_header
                  %s416 = sphi 0, %s420
                  %p417 = scmp.ge.s32.totalorder %s416, 1
                  %s421 = sphi %s356, %s356
                  %s422 = sphi %s349, %s349
                $region73: #{_masked_prediction_forward.1} parent=62 // loop_header_branch
                  %419 = sbr.rel (%p417) target = $region77
                $region74: #{_masked_prediction_forward.1} parent=62 // loop_body
                  %v423 = vld [vmem:[%s421] sm:$0xf]
                  %424 = vst [vmem:[%s422] sm:$0xf] %v423
                  %v425 = vld [vmem:[%s421 + $0xc] sm:$0xf]
                  %426 = vst [vmem:[%s422 + $0x4] sm:$0xf] %v425
                  %v427 = vld [vmem:[%s421 + $0x18] sm:$0xf]
                  %428 = vst [vmem:[%s422 + $0x8] sm:$0xf] %v427
                  %v429 = vld [vmem:[%s421 + $0x24] sm:$0xf]
                  %430 = vst [vmem:[%s422 + $0xc] sm:$0xf] %v429
                  %v431 = vld [vmem:[%s421 + $0x30] sm:$0xf]
                  %432 = vst [vmem:[%s422 + $0x10] sm:$0xf] %v431
                  %v433 = vld [vmem:[%s421 + $0x3c] sm:$0xf]
                  %434 = vst [vmem:[%s422 + $0x14] sm:$0xf] %v433
                  %v435 = vld [vmem:[%s421 + $0x48] sm:$0xf]
                  %436 = vst [vmem:[%s422 + $0x18] sm:$0xf] %v435
                  %v437 = vld [vmem:[%s421 + $0x54] sm:$0xf]
                  %438 = vst [vmem:[%s422 + $0x1c] sm:$0xf] %v437
                  %v439 = vld [vmem:[%s421 + $0x60] sm:$0xf]
                  %440 = vst [vmem:[%s422 + $0x20] sm:$0xf] %v439
                  %v441 = vld [vmem:[%s421 + $0x6c] sm:$0xf]
                  %442 = vst [vmem:[%s422 + $0x24] sm:$0xf] %v441
                  %v443 = vld [vmem:[%s421 + $0x78] sm:$0xf]
                  %444 = vst [vmem:[%s422 + $0x28] sm:$0xf] %v443
                  %v445 = vld [vmem:[%s421 + $0x84] sm:$0xf]
                  %446 = vst [vmem:[%s422 + $0x2c] sm:$0xf] %v445
                  %v447 = vld [vmem:[%s421 + $0x90] sm:$0xf]
                  %448 = vst [vmem:[%s422 + $0x30] sm:$0xf] %v447
                  %v449 = vld [vmem:[%s421 + $0x9c] sm:$0xf]
                  %450 = vst [vmem:[%s422 + $0x34] sm:$0xf] %v449
                  %v451 = vld [vmem:[%s421 + $0xa8] sm:$0xf]
                  %452 = vst [vmem:[%s422 + $0x38] sm:$0xf] %v451
                  %v453 = vld [vmem:[%s421 + $0xb4] sm:$0xf]
                  %454 = vst [vmem:[%s422 + $0x3c] sm:$0xf] %v453
                $region75: #{_masked_prediction_forward.1} parent=62 // loop_footer
                  %s420 = sadd.s32 1, %s416
                $region76: #{_masked_prediction_forward.1} parent=62 // loop_footer_branch
                  %415 = sbr.rel target = $region72
                $region77: #{_masked_prediction_forward.1} parent=62 // loop_exit
                  _
              $region63: #{_masked_prediction_forward.1} parent=47 // pred_fallthru
                _
            $region48: #{_masked_prediction_forward.1} parent=43 // pred_fallthru
              _
            // Predicated region
            $region49: #{_masked_prediction_forward.1} parent=43 // pred_check
              _
            $region50: #{_masked_prediction_forward.1} parent=43 // pred_check_branch
              %362 = sbr.rel (0) target = $region52
            $region51: #{_masked_prediction_forward.1} parent=43 // pred_region
              loop: start=0, step=1, limit=1
              $region53: #{_masked_prediction_forward.1} parent=51 // loop_pre_header
                _
              $region54: #{_masked_prediction_forward.1} parent=51 // loop_header
                %s365 = sphi 0, %s369
                %p366 = scmp.ge.s32.totalorder %s365, 1
                %s370 = sphi %s356, %s356
                %s371 = sphi %s349, %s349
              $region55: #{_masked_prediction_forward.1} parent=51 // loop_header_branch
                %368 = sbr.rel (%p366) target = $region59
              $region56: #{_masked_prediction_forward.1} parent=51 // loop_body
                %v372 = vld [vmem:[%s370] sm:$0xf]
                %373 = vst [vmem:[%s371] sm:$0xf] %v372
                %v374 = vld [vmem:[%s370 + $0xc] sm:$0xf]
                %375 = vst [vmem:[%s371 + $0x4] sm:$0xf] %v374
                %v376 = vld [vmem:[%s370 + $0x18] sm:$0xf]
                %377 = vst [vmem:[%s371 + $0x8] sm:$0xf] %v376
                %v378 = vld [vmem:[%s370 + $0x24] sm:$0xf]
                %379 = vst [vmem:[%s371 + $0xc] sm:$0xf] %v378
                %v380 = vld [vmem:[%s370 + $0x30] sm:$0xf]
                %381 = vst [vmem:[%s371 + $0x10] sm:$0xf] %v380
                %v382 = vld [vmem:[%s370 + $0x3c] sm:$0xf]
                %383 = vst [vmem:[%s371 + $0x14] sm:$0xf] %v382
                %v384 = vld [vmem:[%s370 + $0x48] sm:$0xf]
                %385 = vst [vmem:[%s371 + $0x18] sm:$0xf] %v384
                %v386 = vld [vmem:[%s370 + $0x54] sm:$0xf]
                %387 = vst [vmem:[%s371 + $0x1c] sm:$0xf] %v386
                %v388 = vld [vmem:[%s370 + $0x60] sm:$0xf]
                %389 = vst [vmem:[%s371 + $0x20] sm:$0xf] %v388
                %v390 = vld [vmem:[%s370 + $0x6c] sm:$0xf]
                %391 = vst [vmem:[%s371 + $0x24] sm:$0xf] %v390
                %v392 = vld [vmem:[%s370 + $0x78] sm:$0xf]
                %393 = vst [vmem:[%s371 + $0x28] sm:$0xf] %v392
                %v394 = vld [vmem:[%s370 + $0x84] sm:$0xf]
                %395 = vst [vmem:[%s371 + $0x2c] sm:$0xf] %v394
                %v396 = vld [vmem:[%s370 + $0x90] sm:$0xf]
                %397 = vst [vmem:[%s371 + $0x30] sm:$0xf] %v396
                %v398 = vld [vmem:[%s370 + $0x9c] sm:$0xf]
                %399 = vst [vmem:[%s371 + $0x34] sm:$0xf] %v398
                %v400 = vld [vmem:[%s370 + $0xa8] sm:$0xf]
                %401 = vst [vmem:[%s371 + $0x38] sm:$0xf] %v400
                %v402 = vld [vmem:[%s370 + $0xb4] sm:$0xf]
                %403 = vst [vmem:[%s371 + $0x3c] sm:$0xf] %v402
              $region57: #{_masked_prediction_forward.1} parent=51 // loop_footer
                %s369 = sadd.s32 1, %s365
              $region58: #{_masked_prediction_forward.1} parent=51 // loop_footer_branch
                %364 = sbr.rel target = $region54
              $region59: #{_masked_prediction_forward.1} parent=51 // loop_exit
                _
            $region52: #{_masked_prediction_forward.1} parent=43 // pred_fallthru
              _
          $region44: #{_masked_prediction_forward.1} parent=39 // pred_fallthru
            _
          %455 = vnop
        $region40: #{_masked_prediction_forward.1} parent=31 // pred_fallthru
          _
        // Predicated region
        $region78: #{_masked_prediction_forward.1} parent=31 // pred_check
          %p456 = pneg %p209
        $region79: #{_masked_prediction_forward.1} parent=31 // pred_check_branch
          %458 = sbr.rel (%p456) target = $region81
        $region80: #{_masked_prediction_forward.1} parent=31 // pred_region
          %s459 = smul.u32 %s28, 8
          %s460 = sld [smem:[#allocation7]]
          %p461 = scmp.lt.s32.totalorder %s459, %s460
          %s462 = scalar_select %p461, 1, 0
          %s463 = smul.u32 %s29, %s462
          %p464 = scmp.lt.s32.totalorder %s463, 2
          %s465 = scalar_select %p464, %s463, 2
          %s466 = scalar_lea.vmem %s7, %s465
          %s467 = smul.u32 %s28, 8
          %s468 = sld [smem:[#allocation7]]
          %p469 = scmp.lt.s32.totalorder %s467, %s468
          %s470 = scalar_select %p469, 1, 0
          %s471 = smul.u32 %s29, %s470
        $region81: #{_masked_prediction_forward.1} parent=31 // pred_fallthru
          _
        // Predicated region
        $region82: #{_masked_prediction_forward.1} parent=31 // pred_check
          %p472 = pneg %p235
        $region83: #{_masked_prediction_forward.1} parent=31 // pred_check_branch
          %474 = sbr.rel (%p472) target = $region85
        $region84: #{_masked_prediction_forward.1} parent=31 // pred_region
          %p475 = scmp.lt.s32.totalorder %s28, 1
          %s476 = scalar_select %p475, %s28, 1
          %s477 = smul.addr %s476, 8
          %s478 = scalar_lea.vmem %s8, %s477
        $region85: #{_masked_prediction_forward.1} parent=31 // pred_fallthru
          _
      $region32: #{_masked_prediction_forward.1} parent=5 // pred_fallthru
        _
      %p479 = scmp.le.s32.totalorder 1, %s21
      %p480 = scmp.lt.s32.totalorder %s21, 7
      %p481 = pnand %p479, %p480
      %p482 = pneg %p481
      // Predicated region
      $region86: #{_masked_prediction_forward.1} parent=5 // pred_check
        _
      $region87: #{_masked_prediction_forward.1} parent=5 // pred_check_branch
        %484 = sbr.rel (%p481) target = $region89
      $region88: #{_masked_prediction_forward.1} parent=5 // pred_region
        %s485 = ssub.s32 %s21, 1
        %s486 = sand.u32 %s166, 1
        %s487 = sand.u32 %s166, 1
        %s488 = smul.addr %s487, 64
        %s489 = scalar_lea.vmem [#allocation8], %s488
        // Predicated region
        $region90: #{_masked_prediction_forward.1} parent=88 // pred_check
          %p490 = pneg %p179
        $region91: #{_masked_prediction_forward.1} parent=88 // pred_check_branch
          %492 = sbr.rel (%p490) target = $region93
        $region92: #{_masked_prediction_forward.1} parent=88 // pred_region
          _
        $region93: #{_masked_prediction_forward.1} parent=88 // pred_fallthru
          _
        %p493 = scmp.lt.s32.totalorder %s30, 1
        %s494 = scalar_select %p493, %s30, 1
        %s495 = smul.addr %s494, 4
        %s496 = scalar_lea.vmem %s1, %s495
        %p497 = pneg %p59
        %p498 = pneg %p56
        %p499 = pneg %p80
        %p500 = pneg %p77
        %p501 = pneg %p101
        %p502 = pneg %p98
        %p503 = pneg %p122
        %p504 = pneg %p119
        %p505 = pneg %p143
        %p506 = pneg %p140
        %s507 = sand.u32 %s166, 1
        %s508 = sand.u32 %s166, 1
        %s509 = smul.addr %s508, 64
        %s510 = scalar_lea.vmem [#allocation8], %s509
        %p511 = pneg %p179
        %p512 = pneg %p176
        %s513 = smul.u32 %s30, 8
        %s514 = sld [smem:[#allocation7]]
        %p515 = scmp.lt.s32.totalorder %s513, %s514
        %s516 = scalar_select %p515, 1, 0
        %s517 = smul.u32 %s31, %s516
        %p518 = scmp.lt.s32.totalorder %s517, 2
        %s519 = scalar_select %p518, %s517, 2
        %s520 = scalar_lea.vmem %s7, %s519
        %p521 = pneg %p215
        %p522 = pneg %p212
        %p523 = scmp.lt.s32.totalorder %s30, 1
        %s524 = scalar_select %p523, %s30, 1
        %s525 = smul.addr %s524, 8
        %s526 = scalar_lea.vmem %s8, %s525
        %p527 = pneg %p241
        %p528 = pneg %p238
        %p529 = pneg %p279
        %p530 = pneg %p276
        %s531 = sand.u32 %s266, 1
        %s532 = scalar_lea.sflag [#allocation10], %s531
        %s533 = sand.u32 %s266, 1
        %s534 = smul.addr %s533, 4
        %s535 = scalar_lea.vmem [#allocation9], %s534
        %p536 = pneg %p305
        %p537 = pneg %p302
        %p538 = scmp.lt.s32.totalorder %s30, 1
        %s539 = scalar_select %p538, %s30, 1
        %s540 = smul.addr %s539, 8
        %s541 = scalar_lea.vmem %s10, %s540
        %p542 = scmp.lt.s32.totalorder %s30, 1
        %s543 = scalar_select %p542, %s30, 1
        %s544 = smul.addr %s543, 4
        %s545 = scalar_lea.vmem %s1, %s544
        %s546 = smul.u32 %s30, 8
        %s547 = sld [smem:[#allocation7]]
        %p548 = scmp.lt.s32.totalorder %s546, %s547
        %s549 = scalar_select %p548, 1, 0
        %s550 = smul.u32 %s31, %s549
        %s551 = smul.u32 %s30, 8
        %s552 = sld [smem:[#allocation7]]
        %p553 = scmp.lt.s32.totalorder %s551, %s552
        %s554 = scalar_select %p553, 1, 0
        %s555 = smul.u32 %s31, %s554
        %p556 = scmp.lt.s32.totalorder %s555, 2
        %s557 = scalar_select %p556, %s555, 2
        %s558 = scalar_lea.vmem %s7, %s557
        %s559 = smul.u32 %s30, 8
        %s560 = sld [smem:[#allocation7]]
        %p561 = scmp.lt.s32.totalorder %s559, %s560
        %s562 = scalar_select %p561, 1, 0
        %s563 = smul.u32 %s31, %s562
        %p564 = scmp.lt.s32.totalorder %s30, 1
        %s565 = scalar_select %p564, %s30, 1
        %s566 = smul.addr %s565, 8
        %s567 = scalar_lea.vmem %s8, %s566
        %s568 = smul.u32 %s30, 8
        %s569 = sld [smem:[#allocation7]]
        %p570 = scmp.lt.s32.totalorder %s568, %s569
        %s571 = scalar_select %p570, 1, 0
        %s572 = smul.u32 %s31, %s571
        %p573 = scmp.lt.s32.totalorder %s30, 1
        %s574 = scalar_select %p573, %s30, 1
        %s575 = smul.addr %s574, 8
        %s576 = scalar_lea.vmem %s10, %s575
        %s578 = sld [smem:[#allocation7]]
        %s579 = smul.u32 %s30, 8
        %p580 = scmp.lt.s32.totalorder %s579, %s578
        %p581 = scmp.eq.s32.totalorder %s31, 0
        %p582 = pnand %p580, %p581
        %p583 = pneg %p582
        // Predicated region
        $region94: #{_masked_prediction_forward.1} parent=88 // pred_check
          _
        $region95: #{_masked_prediction_forward.1} parent=88 // pred_check_branch
          %585 = sbr.rel (%p582) target = $region97
        $region96: #{_masked_prediction_forward.1} parent=88 // pred_region
          %v586 = vld [vmem:[%s545] sm:$0xf]
          %v587 = vld [vmem:[%s2] sm:$0xf]
          %v588 = vld [vmem:[%s2 + $0x4] sm:$0xf]
          %v589 = vld [vmem:[%s2 + $0x8] sm:$0xf]
          %v590 = vld [vmem:[%s2 + $0xc] sm:$0xf]
          %v591 = vld [vmem:[%s2 + $0x10] sm:$0xf]
          %v592 = vld [vmem:[%s2 + $0x14] sm:$0xf]
          %v593 = vld [vmem:[%s2 + $0x18] sm:$0xf]
          %v594 = vld [vmem:[%s2 + $0x1c] sm:$0xf]
          %v595 = vld [vmem:[%s2 + $0x20] sm:$0xf]
          %v596 = vld [vmem:[%s2 + $0x24] sm:$0xf]
          %v597 = vld [vmem:[%s2 + $0x28] sm:$0xf]
          %v598 = vld [vmem:[%s2 + $0x2c] sm:$0xf]
          %v599 = vld [vmem:[%s2 + $0x30] sm:$0xf]
          %v600 = vld [vmem:[%s2 + $0x34] sm:$0xf]
          %v601 = vld [vmem:[%s2 + $0x38] sm:$0xf]
          %v602 = vld [vmem:[%s2 + $0x3c] sm:$0xf]
          %v603 = vld [vmem:[%s3] sm:$0x1]
          %v605 = vlaneseq
          %v606 = vshrl.u32 %v605, 7
          %v607 = vsub.s32 0, %v606
          %v608 = vrot.slane %v603, %v607
          %v626 = vunpack.c.l.b16 %v587
          %v627 = vunpack.c.l.b16 %v588
          %v628 = vunpack.c.l.b16 %v589
          %v629 = vunpack.c.l.b16 %v590
          %v630 = vunpack.c.l.b16 %v591
          %v631 = vunpack.c.l.b16 %v592
          %v632 = vunpack.c.l.b16 %v593
          %v633 = vunpack.c.l.b16 %v594
          %v634 = vunpack.c.l.b16 %v595
          %v635 = vunpack.c.l.b16 %v596
          %v636 = vunpack.c.l.b16 %v597
          %v637 = vunpack.c.l.b16 %v598
          %v638 = vunpack.c.l.b16 %v599
          %v639 = vunpack.c.l.b16 %v600
          %v640 = vunpack.c.l.b16 %v601
          %v641 = vunpack.c.l.b16 %v602
          %v642 = vpack.c.b16 %v627, %v626
          %v643 = vpack.c.b16 %v629, %v628
          %v644 = vpack.c.b16 %v631, %v630
          %v645 = vpack.c.b16 %v633, %v632
          %v646 = vpack.c.b16 %v635, %v634
          %v647 = vpack.c.b16 %v637, %v636
          %v648 = vpack.c.b16 %v639, %v638
          %v649 = vpack.c.b16 %v641, %v640
          %658 = vmatprep.subr.bf16.mxu0 0
          %659 = vmatpush1.bf16.msra.mxu0 %v642
          %660 = vmatprep.subr.bf16.mxu0 0
          %661 = vmatpush1.bf16.msra.mxu0 %v643
          %662 = vmatprep.subr.bf16.mxu0 0
          %663 = vmatpush1.bf16.msra.mxu0 %v644
          %664 = vmatprep.subr.bf16.mxu0 0
          %665 = vmatpush1.bf16.msra.mxu0 %v645
          %666 = vmatprep.subr.bf16.mxu0 0
          %667 = vmatpush1.bf16.msra.mxu0 %v646
          %668 = vmatprep.subr.bf16.mxu0 0
          %669 = vmatpush1.bf16.msra.mxu0 %v647
          %670 = vmatprep.subr.bf16.mxu0 0
          %671 = vmatpush1.bf16.msra.mxu0 %v648
          %672 = vmatprep.subr.bf16.mxu0 0
          %673 = vmatpush1.bf16.msra.mxu0 %v649
          %674 = vmatprep.subr.bf16.mxu0 0
          %675 = vmatpush1.bf16.msra.mxu0 0
          %676 = vmatprep.subr.bf16.mxu0 0
          %677 = vmatpush1.bf16.msra.mxu0 0
          %678 = vmatprep.subr.bf16.mxu0 0
          %679 = vmatpush1.bf16.msra.mxu0 0
          %680 = vmatprep.subr.bf16.mxu0 0
          %681 = vmatpush1.bf16.msra.mxu0 0
          %682 = vmatprep.subr.bf16.mxu0 0
          %683 = vmatpush1.bf16.msra.mxu0 0
          %684 = vmatprep.subr.bf16.mxu0 0
          %685 = vmatpush1.bf16.msra.mxu0 0
          %686 = vmatprep.subr.bf16.mxu0 0
          %687 = vmatpush1.bf16.msra.mxu0 0
          %688 = vmatprep.subr.bf16.mxu0 0
          %689 = vmatpush1.bf16.msra.mxu0 0
          %690 = vmatprep.mubr.bf16.mxu0 0
          %691 = vmatmul.mubr.bf16.gmra.mrb[0].mxu0 %v586
          %v692 = vpop.f32.mrb[0].mxu0
          %v693 = vadd.f32 %v608, %v692
          %v694 = vpop.f32.mrb[0].mxu0
          %v695 = vpop.f32.mrb[0].mxu0
          %v696 = vpop.f32.mrb[0].mxu0
          %697 = vdwg.mxu0
          %v698 = vmul.f32 %v693, 0.5
          %v699 = vmul.f32 %v693, 0.70710677
          %v700 = verf.f32.pop %v699
          %v701 = vadd.f32 %v700, 1.0
          %v702 = vmul.f32 %v698, %v701
          %703 = vadd.xlane.f32.xlu0 %v702
          %v704 = vpop.xlane.xlu0 %703
          %v705 = vrcp.pop 128.0
          %v706 = vmul.f32 %v704, %v705
          %v707 = vsub.f32 %v702, %v706
          %v708 = vmul.f32 %v707, %v707
          %709 = vadd.xlane.f32.xlu0 %v708
          %v710 = vpop.xlane.xlu0 %709
          %v711 = vmul.f32 %v710, %v705
          %v712 = vadd.f32 %v711, 1e-05
          %v713 = vrsqrt.pop %v712
          %v714 = vmul.f32 %v707, %v713
          %v715 = vld [vmem:[%s4] sm:$0x1]
          %v717 = vlaneseq
          %v718 = vshrl.u32 %v717, 7
          %v719 = vsub.s32 0, %v718
          %v720 = vrot.slane %v715, %v719
          %v722 = vmul.f32 %v714, %v720
          %v723 = vld [vmem:[%s5] sm:$0x1]
          %v725 = vlaneseq
          %v726 = vshrl.u32 %v725, 7
          %v727 = vsub.s32 0, %v726
          %v728 = vrot.slane %v723, %v727
          %v730 = vadd.f32 %v722, %v728
          %v731 = vpack.c.bf16 %v730, %v730
          %732 = vst [vmem:[#allocation2] sm:$0xf] %v731
          %vm733 = vcmask 7168
          %734 = vst.msk [vmem:[#allocation3] sm:$0xff] %vm733, -inf
          %735 = vst.msk [vmem:[#allocation4] sm:$0xff] %vm733, 0.0
          %736 = vst.msk [vmem:[#allocation5] sm:$0xff] %vm733, 0.0
        $region97: #{_masked_prediction_forward.1} parent=88 // pred_fallthru
          _
        // Predicated region
        $region98: #{_masked_prediction_forward.1} parent=88 // pred_check
          %p737 = pneg %p580
        $region99: #{_masked_prediction_forward.1} parent=88 // pred_check_branch
          %739 = sbr.rel (%p737) target = $region101
        $region100: #{_masked_prediction_forward.1} parent=88 // pred_region
          %v740 = vld [vmem:[#allocation2] sm:$0xf]
          %v741 = vld [vmem:[%s489] sm:$0xf]
          %v742 = vld [vmem:[%s489 + $0x4] sm:$0xf]
          %v743 = vld [vmem:[%s489 + $0x8] sm:$0xf]
          %v744 = vld [vmem:[%s489 + $0xc] sm:$0xf]
          %v745 = vld [vmem:[%s489 + $0x10] sm:$0xf]
          %v746 = vld [vmem:[%s489 + $0x14] sm:$0xf]
          %v747 = vld [vmem:[%s489 + $0x18] sm:$0xf]
          %v748 = vld [vmem:[%s489 + $0x1c] sm:$0xf]
          %v749 = vld [vmem:[%s489 + $0x20] sm:$0xf]
          %v750 = vld [vmem:[%s489 + $0x24] sm:$0xf]
          %v751 = vld [vmem:[%s489 + $0x28] sm:$0xf]
          %v752 = vld [vmem:[%s489 + $0x2c] sm:$0xf]
          %v753 = vld [vmem:[%s489 + $0x30] sm:$0xf]
          %v754 = vld [vmem:[%s489 + $0x34] sm:$0xf]
          %v755 = vld [vmem:[%s489 + $0x38] sm:$0xf]
          %v756 = vld [vmem:[%s489 + $0x3c] sm:$0xf]
          %v757 = vld [vmem:[%s558] sm:$0x1]
          %v759 = vlaneseq
          %v760 = vshrl.u32 %v759, 7
          %v761 = vsub.s32 0, %v760
          %v762 = vrot.slane %v757, %v761
          %v780 = vunpack.c.l.b16 %v741
          %v781 = vunpack.c.l.b16 %v742
          %v782 = vunpack.c.l.b16 %v743
          %v783 = vunpack.c.l.b16 %v744
          %v784 = vunpack.c.l.b16 %v745
          %v785 = vunpack.c.l.b16 %v746
          %v786 = vunpack.c.l.b16 %v747
          %v787 = vunpack.c.l.b16 %v748
          %v788 = vunpack.c.l.b16 %v749
          %v789 = vunpack.c.l.b16 %v750
          %v790 = vunpack.c.l.b16 %v751
          %v791 = vunpack.c.l.b16 %v752
          %v792 = vunpack.c.l.b16 %v753
          %v793 = vunpack.c.l.b16 %v754
          %v794 = vunpack.c.l.b16 %v755
          %v795 = vunpack.c.l.b16 %v756
          %v796 = vpack.c.b16 %v781, %v780
          %v797 = vpack.c.b16 %v783, %v782
          %v798 = vpack.c.b16 %v785, %v784
          %v799 = vpack.c.b16 %v787, %v786
          %v800 = vpack.c.b16 %v789, %v788
          %v801 = vpack.c.b16 %v791, %v790
          %v802 = vpack.c.b16 %v793, %v792
          %v803 = vpack.c.b16 %v795, %v794
          %812 = vmatprep.subr.bf16.mxu0 0
          %813 = vmatpush1.bf16.msra.mxu0 %v796
          %814 = vmatprep.subr.bf16.mxu0 0
          %815 = vmatpush1.bf16.msra.mxu0 %v797
          %816 = vmatprep.subr.bf16.mxu0 0
          %817 = vmatpush1.bf16.msra.mxu0 %v798
          %818 = vmatprep.subr.bf16.mxu0 0
          %819 = vmatpush1.bf16.msra.mxu0 %v799
          %820 = vmatprep.subr.bf16.mxu0 0
          %821 = vmatpush1.bf16.msra.mxu0 %v800
          %822 = vmatprep.subr.bf16.mxu0 0
          %823 = vmatpush1.bf16.msra.mxu0 %v801
          %824 = vmatprep.subr.bf16.mxu0 0
          %825 = vmatpush1.bf16.msra.mxu0 %v802
          %826 = vmatprep.subr.bf16.mxu0 0
          %827 = vmatpush1.bf16.msra.mxu0 %v803
          %828 = vmatprep.subr.bf16.mxu0 0
          %829 = vmatpush1.bf16.msra.mxu0 0
          %830 = vmatprep.subr.bf16.mxu0 0
          %831 = vmatpush1.bf16.msra.mxu0 0
          %832 = vmatprep.subr.bf16.mxu0 0
          %833 = vmatpush1.bf16.msra.mxu0 0
          %834 = vmatprep.subr.bf16.mxu0 0
          %835 = vmatpush1.bf16.msra.mxu0 0
          %836 = vmatprep.subr.bf16.mxu0 0
          %837 = vmatpush1.bf16.msra.mxu0 0
          %838 = vmatprep.subr.bf16.mxu0 0
          %839 = vmatpush1.bf16.msra.mxu0 0
          %840 = vmatprep.subr.bf16.mxu0 0
          %841 = vmatpush1.bf16.msra.mxu0 0
          %842 = vmatprep.subr.bf16.mxu0 0
          %843 = vmatpush1.bf16.msra.mxu0 0
          %844 = vmatprep.mubr.bf16.mxu0 0
          %845 = vmatmul.mubr.bf16.gmra.mrb[0].mxu0 %v740
          %v846 = vpop.f32.mrb[0].mxu0
          %v847 = vadd.f32 %v762, %v846
          %v848 = vpop.f32.mrb[0].mxu0
          %v849 = vpop.f32.mrb[0].mxu0
          %v850 = vpop.f32.mrb[0].mxu0
          %851 = vdwg.mxu0
          %v852 = vpack.c.bf16 %v847, %v847
          %853 = vst [vmem:[%s535] sm:$0xf] %v852
          %v854 = vld [vmem:[#allocation3] sm:$0xff]
          %855 = vmax.xlane.f32.xlu0 %v847
          %v856 = vpop.xlane.xlu0 %855
          %v857 = vmax.f32 %v854, %v856
          %v858 = vsub.f32 %v854, %v857
          %v859 = vmul.f32 %v858, 1.442695
          %v860 = vpow.pop %v859
          %v861 = vld [vmem:[#allocation4] sm:$0xff]
          %v862 = vmul.f32 %v860, %v861
          %864 = vset.pattern.permute.xlu0 0
          %865 = vperm.xlu0 %864, %v857
          %v866 = vpop.permute.xlu0 %865
          %v868 = vsub.f32 %v847, %v866
          %v869 = vmul.f32 %v868, 1.442695
          %v870 = vpow.pop %v869
          %871 = vadd.xlane.f32.xlu0 %v870
          %v872 = vpop.xlane.xlu0 %871
          %v873 = vadd.f32 %v862, %v872
          %vm874 = vcmask 7168
          %875 = vst.msk [vmem:[#allocation4] sm:$0xff] %vm874, %v873
          %876 = vst.msk [vmem:[#allocation3] sm:$0xff] %vm874, %v857
          %v877 = vlaneseq
          %v878 = vand.u32 %v877, 127
          %v879 = vld [vmem:[%s567] sm:$0xff]
          %s880 = smul.u32 %s31, 128
          %v881 = vstv %s880
          %v882 = vsub.s32 %v879, %v881
          %v883 = vld [vmem:[#allocation5] sm:$0xff]
          %884 = vset.pattern.permute.xlu0 0
          %885 = vperm.xlu0 %884, %v882
          %v886 = vpop.permute.xlu0 %885
          %vm887 = vcmp.eq.s32.totalorder %v878, %v886
          %v888 = vsel %vm887, %v847, 0.0
          %889 = vadd.xlane.f32.xlu0 %v888
          %v890 = vpop.xlane.xlu0 %889
          %v891 = vadd.f32 %v883, %v890
          %892 = vst.msk [vmem:[#allocation5] sm:$0xff] %vm874, %v891
        $region101: #{_masked_prediction_forward.1} parent=88 // pred_fallthru
          _
        %p893 = scmp.eq.s32.totalorder %s31, 2
        // Predicated region
        $region102: #{_masked_prediction_forward.1} parent=88 // pred_check
          %p894 = pneg %p893
        $region103: #{_masked_prediction_forward.1} parent=88 // pred_check_branch
          %896 = sbr.rel (%p894) target = $region105
        $region104: #{_masked_prediction_forward.1} parent=88 // pred_region
          %v897 = vld [vmem:[#allocation3] sm:$0xff]
          %v898 = vld [vmem:[#allocation4] sm:$0xff]
          %v899 = vlog2.pop %v898
          %v900 = vmul.f32 %v899, 0.6931472
          %v901 = vadd.f32 %v897, %v900
          %v902 = vld [vmem:[#allocation5] sm:$0xff]
          %v903 = vsub.f32 %v901, %v902
          %v904 = vlaneseq
          %v905 = vshrl.u32 %v904, 7
          %v906 = vstv %s579
          %v907 = vadd.s32 %v905, %v906
          %v908 = vstv %s578
          %vm909 = vcmp.lt.s32.totalorder %v907, %v908
          %v910 = vsel %vm909, 1, 0
          %v911 = vcvt.s32.f32 %v910
          %v912 = vmul.f32 %v903, %v911
          %vm913 = vcmask 7168
          %v914 = vsel %vm913, %v912, 0.0
          %915 = vadd.xlane.f32.xlu0 %v914
          %v916 = vpop.xlane.xlu0 %915
          %v917 = vrot.slane %v916, 4
          %v918 = vadd.f32 %v916, %v917
          %v919 = vrot.slane %v918, 2
          %v920 = vadd.f32 %v918, %v919
          %v921 = vrot.slane %v920, 1
          %v922 = vadd.f32 %v920, %v921
          %s923 = vtos %v922
          %s924 = scalar_select %p580, %s923, 0.0
          %v925 = vstv %s924
          %926 = vst [vmem:[%s576] sm:$0xff] %v925
        $region105: #{_masked_prediction_forward.1} parent=88 // pred_fallthru
          _
        %s927 = sand.u32 %s266, 1
        %s928 = scalar_lea.sflag [#allocation10], %s927
        %s929 = sand.u32 %s266, 1
        %s930 = smul.addr %s929, 4
        %s931 = scalar_lea.vmem [#allocation9], %s930
        %p932 = scmp.lt.s32.totalorder %s30, 1
        %s933 = scalar_select %p932, %s30, 1
        %s934 = smul.addr %s933, 8
        %s935 = scalar_lea.vmem %s10, %s934
        // Predicated region
        $region106: #{_masked_prediction_forward.1} parent=88 // pred_check
          %p936 = pneg %p276
        $region107: #{_masked_prediction_forward.1} parent=88 // pred_check_branch
          %938 = sbr.rel (%p936) target = $region109
        $region108: #{_masked_prediction_forward.1} parent=88 // pred_region
          %s939 = smul.u32 %s30, 8
          %s940 = sld [smem:[#allocation7]]
          %p941 = scmp.lt.s32.totalorder %s939, %s940
          %s942 = scalar_select %p941, 1, 0
          %s943 = smul.u32 %s31, %s942
          %s945 = ssub.s32 64, 64
          %946 = vsyncadd %s928, %s945
          %s947 = smul.addr %s30, 3
          %s948 = sadd.s32 %s943, %s947
          %s949 = smul.addr %s948, 64
          %s950 = scalar_lea.hbm %s9, %s949
          %s952 = sshll.u32 %s931, 4
          %s953 = int_to_ptr.vmem [resolvable:$true] %s952
          %955 = dma.vmem_to_hbm [thread:$0]  %s953, 64, %s950, %s928
        $region109: #{_masked_prediction_forward.1} parent=88 // pred_fallthru
          _
        // Predicated region
        $region110: #{_masked_prediction_forward.1} parent=88 // pred_check
          %p956 = pneg %p302
        $region111: #{_masked_prediction_forward.1} parent=88 // pred_check_branch
          %958 = sbr.rel (%p956) target = $region113
        $region112: #{_masked_prediction_forward.1} parent=88 // pred_region
          _
        $region113: #{_masked_prediction_forward.1} parent=88 // pred_fallthru
          _
      $region89: #{_masked_prediction_forward.1} parent=5 // pred_fallthru
        _
      %p959 = scmp.le.s32.totalorder 2, %s21
      // Predicated region
      $region114: #{_masked_prediction_forward.1} parent=5 // pred_check
        %p960 = pneg %p959
      $region115: #{_masked_prediction_forward.1} parent=5 // pred_check_branch
        %962 = sbr.rel (%p960) target = $region117
      $region116: #{_masked_prediction_forward.1} parent=5 // pred_region
        %s963 = ssub.s32 %s21, 2
        // Predicated region
        $region118: #{_masked_prediction_forward.1} parent=116 // pred_check
          %p964 = pneg %p282
        $region119: #{_masked_prediction_forward.1} parent=116 // pred_check_branch
          %966 = sbr.rel (%p964) target = $region121
        $region120: #{_masked_prediction_forward.1} parent=116 // pred_region
          %s967 = sand.u32 %s267, 1
          %s968 = scalar_lea.sflag [#allocation10], %s967
          %s969 = sand.u32 %s267, 1
          %s970 = smul.addr %s969, 4
          %s971 = scalar_lea.vmem [#allocation9], %s970
          %972 = dma.done %s968, 64
        $region121: #{_masked_prediction_forward.1} parent=116 // pred_fallthru
          _
        // Predicated region
        $region122: #{_masked_prediction_forward.1} parent=116 // pred_check
          %p973 = pneg %p308
        $region123: #{_masked_prediction_forward.1} parent=116 // pred_check_branch
          %975 = sbr.rel (%p973) target = $region125
        $region124: #{_masked_prediction_forward.1} parent=116 // pred_region
          %p976 = scmp.lt.s32.totalorder %s32, 1
          %s977 = scalar_select %p976, %s32, 1
          %s978 = smul.addr %s977, 8
          %s979 = scalar_lea.vmem %s10, %s978
        $region125: #{_masked_prediction_forward.1} parent=116 // pred_fallthru
          _
      $region117: #{_masked_prediction_forward.1} parent=5 // pred_fallthru
        _
    $region6: #{_masked_prediction_forward.1} parent=1 // loop_footer
      %s25 = sadd.s32 1, %s21
    $region7: #{_masked_prediction_forward.1} parent=1 // loop_footer_branch
      %20 = sbr.rel target = $region3
    $region8: #{_masked_prediction_forward.1} parent=1 // loop_exit
      _
    %980 = vsyncpa [#allocation10], 1
    %s981 = scalar_lea.sflag [#allocation10], 1
    %982 = vsyncpa %s981, 1

</llo_original>
